<compile_context>
chip_gen: v6e
topology: v6e:2x2x1
jax: 0.10.0
libtpu: 0.0.40
codegen_flags: <defaults>
</compile_context>

<pallas_src>
import jax
import jax.numpy as jnp
from jax.experimental import pallas as pl
from jax.experimental.pallas import tpu as pltpu  # noqa: F401  (TPU backend)


# ----------------------------- fused Pallas kernel -------------------------- #

def _make_jke_kernel(layer_counts):
    """Build the fused JKE kernel for static per-branch layer counts (pr, cc, ap).

    Ref order: emb,
               [aw, inv_deg, (Wcat, b) * n_layers]  for each of the 3 branches,
               att_w, att_b, out.
    Wcat = concat([W_self; W_neigh], axis=0)  -> (2*d_in, d_out).
    """

    def kernel(*refs):
        o_ref = refs[-1]
        emb = refs[0][...]
        n = emb.shape[0]

        idx = 1
        branch_outs = []
        for n_layers in layer_counts:
            aw_ref, id_ref = refs[idx], refs[idx + 1]
            idx += 2
            # normalize the adjacency once per branch, reuse for every layer
            a_norm = aw_ref[...] * id_ref[...]                      # (N, N)
            h = emb
            for li in range(n_layers):
                wcat = refs[idx][...]                               # (2*d_in, d_out)
                b = refs[idx + 1][...]                              # (1, d_out)
                idx += 2
                agg = jnp.dot(a_norm, h, preferred_element_type=jnp.float32)
                hcat = jnp.concatenate([h, agg], axis=-1)           # (N, 2*d_in)
                h = jnp.dot(hcat, wcat, preferred_element_type=jnp.float32) + b
                if li != n_layers - 1:
                    h = jnp.maximum(h, 0.0)
            branch_outs.append(h)

        pr_i, cc_i, ap_i = branch_outs
        att_w = refs[idx][...]                                      # (D, D)
        att_b = refs[idx + 1][...]                                  # (1, D)

        # ---- APATT: both branch projections in one matmul + one tanh pass ----
        z = jnp.concatenate([pr_i, cc_i], axis=0)                   # (2N, D)
        proj = jnp.tanh(
            jnp.dot(z, att_w, preferred_element_type=jnp.float32) + att_b)

        s_pr = jnp.sum(ap_i * proj[:n, :], axis=-1, keepdims=True)  # (N, 1)
        s_cc = jnp.sum(ap_i * proj[n:, :], axis=-1, keepdims=True)  # (N, 1)
        w_pr = jnp.mean(s_pr, keepdims=True)                        # (1, 1)
        w_cc = jnp.mean(s_cc, keepdims=True)                        # (1, 1)

        # softmax over the 2 branches (scalars kept as (1,1) tiles)
        m = jnp.maximum(w_pr, w_cc)
        e_pr = jnp.exp(w_pr - m)
        e_cc = jnp.exp(w_cc - m)
        denom = e_pr + e_cc
        inv = pl.reciprocal(denom, approx=True)
        inv = inv * (2.0 - denom * inv)          # one Newton step -> f32 exact
        o_ref[...] = (e_pr * inv) * pr_i + (e_cc * inv) * cc_i

    return kernel


# --------------------------------- wrapper ---------------------------------- #

def jke_forward(params, pr_aw, pr_invdeg, cc_aw, cc_invdeg, sps_aw, sps_invdeg):
    emb = params["k_emb"]
    N, emb_dim = emb.shape

    branches = [
        (params["pr_layers"], pr_aw, pr_invdeg),
        (params["cc_layers"], cc_aw, cc_invdeg),
        (params["ap_layers"], sps_aw, sps_invdeg),
    ]
    layer_counts = tuple(len(layers) for layers, _, _ in branches)

    args = [emb]
    for layers, aw, invdeg in branches:
        args += [aw, invdeg]
        for ws, wn, b in layers:
            # merge self/neighbor projections into a single matmul operand
            args += [jnp.concatenate([ws, wn], axis=0), b]
    args += [params["ap_att_w"], params["ap_att_b"]]

    kernel = _make_jke_kernel(layer_counts)
    # No grid / specs: every operand is a full-array block resident in VMEM
    # (total footprint is tiny), intermediates never round-trip to HBM.
    return pl.pallas_call(
        kernel,
        out_shape=jax.ShapeDtypeStruct((N, emb_dim), jnp.float32),
    )(*args)


# ------------------------- pure-JAX reference ------------------------------- #

def _sage_ref(h, a_w, inv_deg, ws, wn, b, relu):
    agg = (a_w @ h) * inv_deg
    out = h @ ws + agg @ wn + b
    return jnp.maximum(out, 0.0) if relu else out


def jke_ref(params, pr_aw, pr_invdeg, cc_aw, cc_invdeg, sps_aw, sps_invdeg):
    emb = params["k_emb"]
    pr_i = emb
    for li, (ws, wn, b) in enumerate(params["pr_layers"]):
        pr_i = _sage_ref(pr_i, pr_aw, pr_invdeg, ws, wn, b,
                         relu=li != len(params["pr_layers"]) - 1)
    cc_i = emb
    for li, (ws, wn, b) in enumerate(params["cc_layers"]):
        cc_i = _sage_ref(cc_i, cc_aw, cc_invdeg, ws, wn, b,
                         relu=li != len(params["cc_layers"]) - 1)
    ap_i = emb
    for li, (ws, wn, b) in enumerate(params["ap_layers"]):
        ap_i = _sage_ref(ap_i, sps_aw, sps_invdeg, ws, wn, b,
                         relu=li != len(params["ap_layers"]) - 1)
    z = jnp.stack([pr_i, cc_i], axis=1)                       # (N,2,D)
    proj = jnp.tanh(z @ params["ap_att_w"] + params["ap_att_b"][0])
    w = jnp.sum(ap_i[:, None, :] * proj, axis=-1, keepdims=True).mean(0)  # (2,1)
    beta = jax.nn.softmax(w, axis=0)                          # (2,1)
    return (beta * z).sum(1)


# ----------------------------------- main ----------------------------------- #

def _make_graph(key, n):
    k_adj, k_ew = jax.random.split(key)
    adj = (jax.random.uniform(k_adj, (n, n)) < 0.5).astype(jnp.float32)
    ew = jax.random.uniform(k_ew, (n, n), minval=0.5, maxval=1.5) * adj
    deg = adj.sum(axis=1, keepdims=True)
    inv_deg = jnp.where(deg > 0, 1.0 / deg, 0.0)
    return adj, ew, inv_deg


def _linear_params(key, d_in, d_out, scale=0.1):
    kw, kb = jax.random.split(key)
    w = scale * jax.random.normal(kw, (d_in, d_out), dtype=jnp.float32)
    b = scale * jax.random.normal(kb, (1, d_out), dtype=jnp.float32)
    return w, b


def _sage_params(key, d_in, d_out):
    k1, k2 = jax.random.split(key)
    ws, b = _linear_params(k1, d_in, d_out)
    wn, _ = _linear_params(k2, d_in, d_out)
    return ws, wn, b


if __name__ == "__main__":
    N = 8              # number of nodes (k_emb rows)
    emb_dim = 16
    hidden = 8 * emb_dim   # 128
    layer_num = 2

    root = jax.random.PRNGKey(0)
    keys = jax.random.split(root, 16)

    params = {
        "k_emb": 0.1 * jax.random.normal(keys[0], (N, emb_dim), dtype=jnp.float32),
        "pr_layers": [_sage_params(keys[1], emb_dim, hidden),
                      _sage_params(keys[2], hidden, emb_dim)],
        "cc_layers": [_sage_params(keys[3], emb_dim, hidden),
                      _sage_params(keys[4], hidden, emb_dim)],
        "ap_layers": [_sage_params(keys[5], emb_dim, emb_dim),
                      _sage_params(keys[6], emb_dim, emb_dim)],
    }
    ap_w, ap_b = _linear_params(keys[7], emb_dim, emb_dim)
    params["ap_att_w"] = ap_w
    params["ap_att_b"] = ap_b

    # graphs
    pr_adj, pr_aw, pr_invdeg = _make_graph(keys[8], N)     # weighted
    cc_adj, cc_aw, cc_invdeg = _make_graph(keys[9], N)     # weighted
    sps_adj, _, sps_invdeg = _make_graph(keys[10], N)      # unweighted (weights = 1)
    sps_aw = sps_adj

    out = jke_forward(params, pr_aw, pr_invdeg, cc_aw, cc_invdeg, sps_aw, sps_invdeg)
    out = jax.block_until_ready(out)

    ref = jke_ref(params, pr_aw, pr_invdeg, cc_aw, cc_invdeg, sps_aw, sps_invdeg)
    assert out.shape == (N, emb_dim)
    assert jnp.allclose(out, ref, rtol=1e-4, atol=1e-4), (out, ref)

    print("KERNEL_OK")
</pallas_src>

<mosaic_0001>
module attributes {stable_mosaic.version = 11 : i64} {
  func.func @kernel(%arg0: memref<8x16xf32, #tpu.memory_space<vmem>>, %arg1: memref<8x8xf32, #tpu.memory_space<vmem>>, %arg2: memref<8x1xf32, #tpu.memory_space<vmem>>, %arg3: memref<32x128xf32, #tpu.memory_space<vmem>>, %arg4: memref<1x128xf32, #tpu.memory_space<vmem>>, %arg5: memref<256x16xf32, #tpu.memory_space<vmem>>, %arg6: memref<1x16xf32, #tpu.memory_space<vmem>>, %arg7: memref<8x8xf32, #tpu.memory_space<vmem>>, %arg8: memref<8x1xf32, #tpu.memory_space<vmem>>, %arg9: memref<32x128xf32, #tpu.memory_space<vmem>>, %arg10: memref<1x128xf32, #tpu.memory_space<vmem>>, %arg11: memref<256x16xf32, #tpu.memory_space<vmem>>, %arg12: memref<1x16xf32, #tpu.memory_space<vmem>>, %arg13: memref<8x8xf32, #tpu.memory_space<vmem>>, %arg14: memref<8x1xf32, #tpu.memory_space<vmem>>, %arg15: memref<32x16xf32, #tpu.memory_space<vmem>>, %arg16: memref<1x16xf32, #tpu.memory_space<vmem>>, %arg17: memref<32x16xf32, #tpu.memory_space<vmem>>, %arg18: memref<1x16xf32, #tpu.memory_space<vmem>>, %arg19: memref<16x16xf32, #tpu.memory_space<vmem>>, %arg20: memref<1x16xf32, #tpu.memory_space<vmem>>, %arg21: memref<8x16xf32, #tpu.memory_space<vmem>>) attributes {dimension_semantics = [], scalar_prefetch = 0 : i64, scratch_operands = 0 : i64, tpu.core_type = #tpu.core_type<tc>} {
    %c0 = arith.constant 0 : index
    %c0_0 = arith.constant 0 : index
    %0 = vector.load %arg0[%c0, %c0_0] : memref<8x16xf32, #tpu.memory_space<vmem>>, vector<8x16xf32>
    %c0_1 = arith.constant 0 : index
    %c0_2 = arith.constant 0 : index
    %1 = vector.load %arg1[%c0_1, %c0_2] : memref<8x8xf32, #tpu.memory_space<vmem>>, vector<8x8xf32>
    %c0_3 = arith.constant 0 : index
    %c0_4 = arith.constant 0 : index
    %2 = vector.load %arg2[%c0_3, %c0_4] : memref<8x1xf32, #tpu.memory_space<vmem>>, vector<8x1xf32>
    %3 = vector.broadcast %2 : vector<8x1xf32> to vector<8x8xf32>
    %4 = arith.mulf %1, %3 : vector<8x8xf32>
    %c0_5 = arith.constant 0 : index
    %c0_6 = arith.constant 0 : index
    %5 = vector.load %arg3[%c0_5, %c0_6] : memref<32x128xf32, #tpu.memory_space<vmem>>, vector<32x128xf32>
    %c0_7 = arith.constant 0 : index
    %c0_8 = arith.constant 0 : index
    %6 = vector.load %arg4[%c0_7, %c0_8] : memref<1x128xf32, #tpu.memory_space<vmem>>, vector<1x128xf32>
    %cst = arith.constant dense<0.000000e+00> : vector<8x16xf32>
    %7 = tpu.matmul %4, %0, %cst {dimension_numbers = #tpu.dot_dimension_numbers<[1], [0], [0], [1], [0, 0, 1, 1], [], []>} : vector<8x8xf32>, vector<8x16xf32>, vector<8x16xf32> -> vector<8x16xf32>
    %8 = tpu.concatenate %0, %7 in 1 : vector<8x16xf32>, vector<8x16xf32> -> vector<8x32xf32>
    %cst_9 = arith.constant dense<0.000000e+00> : vector<8x128xf32>
    %9 = tpu.matmul %8, %5, %cst_9 {dimension_numbers = #tpu.dot_dimension_numbers<[1], [0], [0], [1], [0, 0, 1, 1], [], []>} : vector<8x32xf32>, vector<32x128xf32>, vector<8x128xf32> -> vector<8x128xf32>
    %10 = vector.broadcast %6 : vector<1x128xf32> to vector<8x128xf32>
    %11 = arith.addf %9, %10 : vector<8x128xf32>
    %cst_10 = arith.constant 0.000000e+00 : f32
    %12 = vector.broadcast %cst_10 : f32 to vector<8x128xf32>
    %13 = arith.maximumf %11, %12 : vector<8x128xf32>
    %c0_11 = arith.constant 0 : index
    %c0_12 = arith.constant 0 : index
    %14 = vector.load %arg5[%c0_11, %c0_12] : memref<256x16xf32, #tpu.memory_space<vmem>>, vector<256x16xf32>
    %c0_13 = arith.constant 0 : index
    %c0_14 = arith.constant 0 : index
    %15 = vector.load %arg6[%c0_13, %c0_14] : memref<1x16xf32, #tpu.memory_space<vmem>>, vector<1x16xf32>
    %cst_15 = arith.constant dense<0.000000e+00> : vector<8x128xf32>
    %16 = tpu.matmul %4, %13, %cst_15 {dimension_numbers = #tpu.dot_dimension_numbers<[1], [0], [0], [1], [0, 0, 1, 1], [], []>} : vector<8x8xf32>, vector<8x128xf32>, vector<8x128xf32> -> vector<8x128xf32>
    %17 = tpu.concatenate %13, %16 in 1 : vector<8x128xf32>, vector<8x128xf32> -> vector<8x256xf32>
    %cst_16 = arith.constant dense<0.000000e+00> : vector<8x16xf32>
    %18 = tpu.matmul %17, %14, %cst_16 {dimension_numbers = #tpu.dot_dimension_numbers<[1], [0], [0], [1], [0, 0, 1, 1], [], []>} : vector<8x256xf32>, vector<256x16xf32>, vector<8x16xf32> -> vector<8x16xf32>
    %19 = vector.broadcast %15 : vector<1x16xf32> to vector<8x16xf32>
    %20 = arith.addf %18, %19 : vector<8x16xf32>
    %c0_17 = arith.constant 0 : index
    %c0_18 = arith.constant 0 : index
    %21 = vector.load %arg7[%c0_17, %c0_18] : memref<8x8xf32, #tpu.memory_space<vmem>>, vector<8x8xf32>
    %c0_19 = arith.constant 0 : index
    %c0_20 = arith.constant 0 : index
    %22 = vector.load %arg8[%c0_19, %c0_20] : memref<8x1xf32, #tpu.memory_space<vmem>>, vector<8x1xf32>
    %23 = vector.broadcast %22 : vector<8x1xf32> to vector<8x8xf32>
    %24 = arith.mulf %21, %23 : vector<8x8xf32>
    %c0_21 = arith.constant 0 : index
    %c0_22 = arith.constant 0 : index
    %25 = vector.load %arg9[%c0_21, %c0_22] : memref<32x128xf32, #tpu.memory_space<vmem>>, vector<32x128xf32>
    %c0_23 = arith.constant 0 : index
    %c0_24 = arith.constant 0 : index
    %26 = vector.load %arg10[%c0_23, %c0_24] : memref<1x128xf32, #tpu.memory_space<vmem>>, vector<1x128xf32>
    %cst_25 = arith.constant dense<0.000000e+00> : vector<8x16xf32>
    %27 = tpu.matmul %24, %0, %cst_25 {dimension_numbers = #tpu.dot_dimension_numbers<[1], [0], [0], [1], [0, 0, 1, 1], [], []>} : vector<8x8xf32>, vector<8x16xf32>, vector<8x16xf32> -> vector<8x16xf32>
    %28 = tpu.concatenate %0, %27 in 1 : vector<8x16xf32>, vector<8x16xf32> -> vector<8x32xf32>
    %cst_26 = arith.constant dense<0.000000e+00> : vector<8x128xf32>
    %29 = tpu.matmul %28, %25, %cst_26 {dimension_numbers = #tpu.dot_dimension_numbers<[1], [0], [0], [1], [0, 0, 1, 1], [], []>} : vector<8x32xf32>, vector<32x128xf32>, vector<8x128xf32> -> vector<8x128xf32>
    %30 = vector.broadcast %26 : vector<1x128xf32> to vector<8x128xf32>
    %31 = arith.addf %29, %30 : vector<8x128xf32>
    %cst_27 = arith.constant 0.000000e+00 : f32
    %32 = vector.broadcast %cst_27 : f32 to vector<8x128xf32>
    %33 = arith.maximumf %31, %32 : vector<8x128xf32>
    %c0_28 = arith.constant 0 : index
    %c0_29 = arith.constant 0 : index
    %34 = vector.load %arg11[%c0_28, %c0_29] : memref<256x16xf32, #tpu.memory_space<vmem>>, vector<256x16xf32>
    %c0_30 = arith.constant 0 : index
    %c0_31 = arith.constant 0 : index
    %35 = vector.load %arg12[%c0_30, %c0_31] : memref<1x16xf32, #tpu.memory_space<vmem>>, vector<1x16xf32>
    %cst_32 = arith.constant dense<0.000000e+00> : vector<8x128xf32>
    %36 = tpu.matmul %24, %33, %cst_32 {dimension_numbers = #tpu.dot_dimension_numbers<[1], [0], [0], [1], [0, 0, 1, 1], [], []>} : vector<8x8xf32>, vector<8x128xf32>, vector<8x128xf32> -> vector<8x128xf32>
    %37 = tpu.concatenate %33, %36 in 1 : vector<8x128xf32>, vector<8x128xf32> -> vector<8x256xf32>
    %cst_33 = arith.constant dense<0.000000e+00> : vector<8x16xf32>
    %38 = tpu.matmul %37, %34, %cst_33 {dimension_numbers = #tpu.dot_dimension_numbers<[1], [0], [0], [1], [0, 0, 1, 1], [], []>} : vector<8x256xf32>, vector<256x16xf32>, vector<8x16xf32> -> vector<8x16xf32>
    %39 = vector.broadcast %35 : vector<1x16xf32> to vector<8x16xf32>
    %40 = arith.addf %38, %39 : vector<8x16xf32>
    %c0_34 = arith.constant 0 : index
    %c0_35 = arith.constant 0 : index
    %41 = vector.load %arg13[%c0_34, %c0_35] : memref<8x8xf32, #tpu.memory_space<vmem>>, vector<8x8xf32>
    %c0_36 = arith.constant 0 : index
    %c0_37 = arith.constant 0 : index
    %42 = vector.load %arg14[%c0_36, %c0_37] : memref<8x1xf32, #tpu.memory_space<vmem>>, vector<8x1xf32>
    %43 = vector.broadcast %42 : vector<8x1xf32> to vector<8x8xf32>
    %44 = arith.mulf %41, %43 : vector<8x8xf32>
    %c0_38 = arith.constant 0 : index
    %c0_39 = arith.constant 0 : index
    %45 = vector.load %arg15[%c0_38, %c0_39] : memref<32x16xf32, #tpu.memory_space<vmem>>, vector<32x16xf32>
    %c0_40 = arith.constant 0 : index
    %c0_41 = arith.constant 0 : index
    %46 = vector.load %arg16[%c0_40, %c0_41] : memref<1x16xf32, #tpu.memory_space<vmem>>, vector<1x16xf32>
    %cst_42 = arith.constant dense<0.000000e+00> : vector<8x16xf32>
    %47 = tpu.matmul %44, %0, %cst_42 {dimension_numbers = #tpu.dot_dimension_numbers<[1], [0], [0], [1], [0, 0, 1, 1], [], []>} : vector<8x8xf32>, vector<8x16xf32>, vector<8x16xf32> -> vector<8x16xf32>
    %48 = tpu.concatenate %0, %47 in 1 : vector<8x16xf32>, vector<8x16xf32> -> vector<8x32xf32>
    %cst_43 = arith.constant dense<0.000000e+00> : vector<8x16xf32>
    %49 = tpu.matmul %48, %45, %cst_43 {dimension_numbers = #tpu.dot_dimension_numbers<[1], [0], [0], [1], [0, 0, 1, 1], [], []>} : vector<8x32xf32>, vector<32x16xf32>, vector<8x16xf32> -> vector<8x16xf32>
    %50 = vector.broadcast %46 : vector<1x16xf32> to vector<8x16xf32>
    %51 = arith.addf %49, %50 : vector<8x16xf32>
    %cst_44 = arith.constant 0.000000e+00 : f32
    %52 = vector.broadcast %cst_44 : f32 to vector<8x16xf32>
    %53 = arith.maximumf %51, %52 : vector<8x16xf32>
    %c0_45 = arith.constant 0 : index
    %c0_46 = arith.constant 0 : index
    %54 = vector.load %arg17[%c0_45, %c0_46] : memref<32x16xf32, #tpu.memory_space<vmem>>, vector<32x16xf32>
    %c0_47 = arith.constant 0 : index
    %c0_48 = arith.constant 0 : index
    %55 = vector.load %arg18[%c0_47, %c0_48] : memref<1x16xf32, #tpu.memory_space<vmem>>, vector<1x16xf32>
    %cst_49 = arith.constant dense<0.000000e+00> : vector<8x16xf32>
    %56 = tpu.matmul %44, %53, %cst_49 {dimension_numbers = #tpu.dot_dimension_numbers<[1], [0], [0], [1], [0, 0, 1, 1], [], []>} : vector<8x8xf32>, vector<8x16xf32>, vector<8x16xf32> -> vector<8x16xf32>
    %57 = tpu.concatenate %53, %56 in 1 : vector<8x16xf32>, vector<8x16xf32> -> vector<8x32xf32>
    %cst_50 = arith.constant dense<0.000000e+00> : vector<8x16xf32>
    %58 = tpu.matmul %57, %54, %cst_50 {dimension_numbers = #tpu.dot_dimension_numbers<[1], [0], [0], [1], [0, 0, 1, 1], [], []>} : vector<8x32xf32>, vector<32x16xf32>, vector<8x16xf32> -> vector<8x16xf32>
    %59 = vector.broadcast %55 : vector<1x16xf32> to vector<8x16xf32>
    %60 = arith.addf %58, %59 : vector<8x16xf32>
    %c0_51 = arith.constant 0 : index
    %c0_52 = arith.constant 0 : index
    %61 = vector.load %arg19[%c0_51, %c0_52] : memref<16x16xf32, #tpu.memory_space<vmem>>, vector<16x16xf32>
    %c0_53 = arith.constant 0 : index
    %c0_54 = arith.constant 0 : index
    %62 = vector.load %arg20[%c0_53, %c0_54] : memref<1x16xf32, #tpu.memory_space<vmem>>, vector<1x16xf32>
    %63 = tpu.concatenate %20, %40 in 0 : vector<8x16xf32>, vector<8x16xf32> -> vector<16x16xf32>
    %cst_55 = arith.constant dense<0.000000e+00> : vector<16x16xf32>
    %64 = tpu.matmul %63, %61, %cst_55 {dimension_numbers = #tpu.dot_dimension_numbers<[1], [0], [0], [1], [0, 0, 1, 1], [], []>} : vector<16x16xf32>, vector<16x16xf32>, vector<16x16xf32> -> vector<16x16xf32>
    %65 = vector.broadcast %62 : vector<1x16xf32> to vector<16x16xf32>
    %66 = arith.addf %64, %65 : vector<16x16xf32>
    %67 = math.tanh %66 : vector<16x16xf32>
    %68 = vector.extract_strided_slice %67 {offsets = [0, 0], sizes = [8, 16], strides = [1, 1]} : vector<16x16xf32> to vector<8x16xf32>
    %69 = arith.mulf %60, %68 : vector<8x16xf32>
    %cst_56 = arith.constant dense<0.000000e+00> : vector<8xf32>
    %70 = vector.multi_reduction <add>, %69, %cst_56 [1] : vector<8x16xf32> to vector<8xf32>
    %71 = vector.shape_cast %70 : vector<8xf32> to vector<8x1xf32>
    %72 = vector.extract_strided_slice %67 {offsets = [8, 0], sizes = [8, 16], strides = [1, 1]} : vector<16x16xf32> to vector<8x16xf32>
    %73 = arith.mulf %60, %72 : vector<8x16xf32>
    %cst_57 = arith.constant dense<0.000000e+00> : vector<8xf32>
    %74 = vector.multi_reduction <add>, %73, %cst_57 [1] : vector<8x16xf32> to vector<8xf32>
    %75 = vector.shape_cast %74 : vector<8xf32> to vector<8x1xf32>
    %76 = vector.shape_cast %71 : vector<8x1xf32> to vector<1x8x1xf32>
    %cst_58 = arith.constant dense<0.000000e+00> : vector<1xf32>
    %77 = vector.multi_reduction <add>, %76, %cst_58 [1, 2] : vector<1x8x1xf32> to vector<1xf32>
    %78 = vector.shape_cast %77 : vector<1xf32> to vector<1x1x1xf32>
    %79 = vector.extract %78[0, 0, 0] : f32 from vector<1x1x1xf32>
    %80 = vector.broadcast %79 : f32 to vector<1x1xf32>
    %cst_59 = arith.constant 8.000000e+00 : f32
    %81 = vector.broadcast %cst_59 : f32 to vector<1x1xf32>
    %82 = arith.divf %80, %81 : vector<1x1xf32>
    %83 = vector.shape_cast %75 : vector<8x1xf32> to vector<1x8x1xf32>
    %cst_60 = arith.constant dense<0.000000e+00> : vector<1xf32>
    %84 = vector.multi_reduction <add>, %83, %cst_60 [1, 2] : vector<1x8x1xf32> to vector<1xf32>
    %85 = vector.shape_cast %84 : vector<1xf32> to vector<1x1x1xf32>
    %86 = vector.extract %85[0, 0, 0] : f32 from vector<1x1x1xf32>
    %87 = vector.broadcast %86 : f32 to vector<1x1xf32>
    %cst_61 = arith.constant 8.000000e+00 : f32
    %88 = vector.broadcast %cst_61 : f32 to vector<1x1xf32>
    %89 = arith.divf %87, %88 : vector<1x1xf32>
    %90 = arith.maximumf %82, %89 : vector<1x1xf32>
    %91 = arith.subf %82, %90 : vector<1x1xf32>
    %92 = math.exp %91 : vector<1x1xf32>
    %93 = arith.subf %89, %90 : vector<1x1xf32>
    %94 = math.exp %93 : vector<1x1xf32>
    %95 = arith.addf %92, %94 : vector<1x1xf32>
    %96 = tpu.reciprocal %95 {approx = true} : vector<1x1xf32> -> vector<1x1xf32>
    %97 = arith.mulf %95, %96 : vector<1x1xf32>
    %cst_62 = arith.constant 2.000000e+00 : f32
    %98 = vector.broadcast %cst_62 : f32 to vector<1x1xf32>
    %99 = arith.subf %98, %97 : vector<1x1xf32>
    %100 = arith.mulf %96, %99 : vector<1x1xf32>
    %101 = arith.mulf %92, %100 : vector<1x1xf32>
    %102 = vector.broadcast %101 : vector<1x1xf32> to vector<8x16xf32>
    %103 = arith.mulf %102, %20 : vector<8x16xf32>
    %104 = arith.mulf %94, %100 : vector<1x1xf32>
    %105 = vector.broadcast %104 : vector<1x1xf32> to vector<8x16xf32>
    %106 = arith.mulf %105, %40 : vector<8x16xf32>
    %107 = arith.addf %103, %106 : vector<8x16xf32>
    %c0_63 = arith.constant 0 : index
    %c0_64 = arith.constant 0 : index
    %108 = vector.load %arg21[%c0_63, %c0_64] : memref<8x16xf32, #tpu.memory_space<vmem>>, vector<8x16xf32>
    tpu.vector_store %arg21[%c0_63, %c0_64], %107 {strides = array<i32>} : memref<8x16xf32, #tpu.memory_space<vmem>>, vector<8x16xf32>,
    return
  }
}

</mosaic_0001>

<llo_original>
// kernel: tpu_custom_call.1
$region0: #{tpu_custom_call.1}
  #allocation0 [shape = 'u32[]', space=smem, size = 0x4, offset = 0x4, fixed_abs, tag = 'smem constant byte address 0x4 - core index']
  #allocation1 [shape = 'u32[144,128]{1,0:T(1,128)}', space=vmem, size = 0x12000, scoped, tag = 'internal scratch']
  %s0 = inlined_call_operand.vmem [shape: f32[8,16], index: 0, kind: input, shape index: {}]
  %s1 = inlined_call_operand.vmem [shape: f32[8,8], index: 1, kind: input, shape index: {}]
  %s2 = inlined_call_operand.vmem [shape: f32[8,1], index: 2, kind: input, shape index: {}]
  %s3 = inlined_call_operand.vmem [shape: f32[32,128], index: 3, kind: input, shape index: {}]
  %s4 = inlined_call_operand.vmem [shape: f32[1,128], index: 4, kind: input, shape index: {}]
  %s5 = inlined_call_operand.vmem [shape: f32[256,16], index: 5, kind: input, shape index: {}]
  %s6 = inlined_call_operand.vmem [shape: f32[1,16], index: 6, kind: input, shape index: {}]
  %s7 = inlined_call_operand.vmem [shape: f32[8,8], index: 7, kind: input, shape index: {}]
  %s8 = inlined_call_operand.vmem [shape: f32[8,1], index: 8, kind: input, shape index: {}]
  %s9 = inlined_call_operand.vmem [shape: f32[32,128], index: 9, kind: input, shape index: {}]
  %s10 = inlined_call_operand.vmem [shape: f32[1,128], index: 10, kind: input, shape index: {}]
  %s11 = inlined_call_operand.vmem [shape: f32[256,16], index: 11, kind: input, shape index: {}]
  %s12 = inlined_call_operand.vmem [shape: f32[1,16], index: 12, kind: input, shape index: {}]
  %s13 = inlined_call_operand.vmem [shape: f32[8,8], index: 13, kind: input, shape index: {}]
  %s14 = inlined_call_operand.vmem [shape: f32[8,1], index: 14, kind: input, shape index: {}]
  %s15 = inlined_call_operand.vmem [shape: f32[32,16], index: 15, kind: input, shape index: {}]
  %s16 = inlined_call_operand.vmem [shape: f32[1,16], index: 16, kind: input, shape index: {}]
  %s17 = inlined_call_operand.vmem [shape: f32[32,16], index: 17, kind: input, shape index: {}]
  %s18 = inlined_call_operand.vmem [shape: f32[1,16], index: 18, kind: input, shape index: {}]
  %s19 = inlined_call_operand.vmem [shape: f32[16,16], index: 19, kind: input, shape index: {}]
  %s20 = inlined_call_operand.vmem [shape: f32[1,16], index: 20, kind: input, shape index: {}]
  %s21 = inlined_call_operand.hbm [shape: f32[8,16], index: 21, kind: output, shape index: {}]
  %s22 = sld [smem:[#allocation0]]
  $region94: #{tpu_custom_call.1} parent=0
    _
  %s24 = ssub.s32 1, %s22
  %s25 = scalar_select 0, %s24, %s22
  $region1: #{tpu_custom_call.1} parent=0
    #allocation2 [shape = 'u8[4096]{0}', space=vmem, size = 0x1000, scoped, tag = 'output window, operand 0, single buffered']
    #allocation3 [shape = 's32[1]{0}', space=sflag, size = 0x4, scoped, tag = 'scoped memory for tpu_custom_call.1']
    %26 = vsyncpa [#allocation3], 0
    // Predicated region
    $region2: #{tpu_custom_call.1} parent=1 // pred_check
      _
    $region3: #{tpu_custom_call.1} parent=1 // pred_check_branch
      %28 = sbr.rel (0) target = $region5
    $region4: #{tpu_custom_call.1} parent=1 // pred_region
      _
    $region5: #{tpu_custom_call.1} parent=1 // pred_fallthru
      _
    // Predicated region
    $region6: #{tpu_custom_call.1} parent=1 // pred_check
      _
    $region7: #{tpu_custom_call.1} parent=1 // pred_check_branch
      %30 = sbr.rel (0) target = $region9
    $region8: #{tpu_custom_call.1} parent=1 // pred_region
      _
    $region9: #{tpu_custom_call.1} parent=1 // pred_fallthru
      _
    // Predicated region
    $region10: #{tpu_custom_call.1} parent=1 // pred_check
      _
    $region11: #{tpu_custom_call.1} parent=1 // pred_check_branch
      %32 = sbr.rel (0) target = $region13
    $region12: #{tpu_custom_call.1} parent=1 // pred_region
      _
    $region13: #{tpu_custom_call.1} parent=1 // pred_fallthru
      _
    // Predicated region
    $region14: #{tpu_custom_call.1} parent=1 // pred_check
      _
    $region15: #{tpu_custom_call.1} parent=1 // pred_check_branch
      %34 = sbr.rel (0) target = $region17
    $region16: #{tpu_custom_call.1} parent=1 // pred_region
      _
    $region17: #{tpu_custom_call.1} parent=1 // pred_fallthru
      _
    // Predicated region
    $region18: #{tpu_custom_call.1} parent=1 // pred_check
      _
    $region19: #{tpu_custom_call.1} parent=1 // pred_check_branch
      %36 = sbr.rel (0) target = $region21
    $region20: #{tpu_custom_call.1} parent=1 // pred_region
      _
    $region21: #{tpu_custom_call.1} parent=1 // pred_fallthru
      _
    // Predicated region
    $region22: #{tpu_custom_call.1} parent=1 // pred_check
      _
    $region23: #{tpu_custom_call.1} parent=1 // pred_check_branch
      %38 = sbr.rel (0) target = $region25
    $region24: #{tpu_custom_call.1} parent=1 // pred_region
      _
    $region25: #{tpu_custom_call.1} parent=1 // pred_fallthru
      _
    // Predicated region
    $region26: #{tpu_custom_call.1} parent=1 // pred_check
      _
    $region27: #{tpu_custom_call.1} parent=1 // pred_check_branch
      %40 = sbr.rel (0) target = $region29
    $region28: #{tpu_custom_call.1} parent=1 // pred_region
      _
    $region29: #{tpu_custom_call.1} parent=1 // pred_fallthru
      _
    // Predicated region
    $region30: #{tpu_custom_call.1} parent=1 // pred_check
      _
    $region31: #{tpu_custom_call.1} parent=1 // pred_check_branch
      %42 = sbr.rel (0) target = $region33
    $region32: #{tpu_custom_call.1} parent=1 // pred_region
      _
    $region33: #{tpu_custom_call.1} parent=1 // pred_fallthru
      _
    // Predicated region
    $region34: #{tpu_custom_call.1} parent=1 // pred_check
      _
    $region35: #{tpu_custom_call.1} parent=1 // pred_check_branch
      %44 = sbr.rel (0) target = $region37
    $region36: #{tpu_custom_call.1} parent=1 // pred_region
      _
    $region37: #{tpu_custom_call.1} parent=1 // pred_fallthru
      _
    // Predicated region
    $region38: #{tpu_custom_call.1} parent=1 // pred_check
      _
    $region39: #{tpu_custom_call.1} parent=1 // pred_check_branch
      %46 = sbr.rel (0) target = $region41
    $region40: #{tpu_custom_call.1} parent=1 // pred_region
      _
    $region41: #{tpu_custom_call.1} parent=1 // pred_fallthru
      _
    // Predicated region
    $region42: #{tpu_custom_call.1} parent=1 // pred_check
      _
    $region43: #{tpu_custom_call.1} parent=1 // pred_check_branch
      %48 = sbr.rel (0) target = $region45
    $region44: #{tpu_custom_call.1} parent=1 // pred_region
      _
    $region45: #{tpu_custom_call.1} parent=1 // pred_fallthru
      _
    // Predicated region
    $region46: #{tpu_custom_call.1} parent=1 // pred_check
      _
    $region47: #{tpu_custom_call.1} parent=1 // pred_check_branch
      %50 = sbr.rel (0) target = $region49
    $region48: #{tpu_custom_call.1} parent=1 // pred_region
      _
    $region49: #{tpu_custom_call.1} parent=1 // pred_fallthru
      _
    // Predicated region
    $region50: #{tpu_custom_call.1} parent=1 // pred_check
      _
    $region51: #{tpu_custom_call.1} parent=1 // pred_check_branch
      %52 = sbr.rel (0) target = $region53
    $region52: #{tpu_custom_call.1} parent=1 // pred_region
      _
    $region53: #{tpu_custom_call.1} parent=1 // pred_fallthru
      _
    // Predicated region
    $region54: #{tpu_custom_call.1} parent=1 // pred_check
      _
    $region55: #{tpu_custom_call.1} parent=1 // pred_check_branch
      %54 = sbr.rel (0) target = $region57
    $region56: #{tpu_custom_call.1} parent=1 // pred_region
      _
    $region57: #{tpu_custom_call.1} parent=1 // pred_fallthru
      _
    // Predicated region
    $region58: #{tpu_custom_call.1} parent=1 // pred_check
      _
    $region59: #{tpu_custom_call.1} parent=1 // pred_check_branch
      %56 = sbr.rel (0) target = $region61
    $region60: #{tpu_custom_call.1} parent=1 // pred_region
      _
    $region61: #{tpu_custom_call.1} parent=1 // pred_fallthru
      _
    // Predicated region
    $region62: #{tpu_custom_call.1} parent=1 // pred_check
      _
    $region63: #{tpu_custom_call.1} parent=1 // pred_check_branch
      %58 = sbr.rel (0) target = $region65
    $region64: #{tpu_custom_call.1} parent=1 // pred_region
      _
    $region65: #{tpu_custom_call.1} parent=1 // pred_fallthru
      _
    // Predicated region
    $region66: #{tpu_custom_call.1} parent=1 // pred_check
      _
    $region67: #{tpu_custom_call.1} parent=1 // pred_check_branch
      %60 = sbr.rel (0) target = $region69
    $region68: #{tpu_custom_call.1} parent=1 // pred_region
      _
    $region69: #{tpu_custom_call.1} parent=1 // pred_fallthru
      _
    // Predicated region
    $region70: #{tpu_custom_call.1} parent=1 // pred_check
      _
    $region71: #{tpu_custom_call.1} parent=1 // pred_check_branch
      %62 = sbr.rel (0) target = $region73
    $region72: #{tpu_custom_call.1} parent=1 // pred_region
      _
    $region73: #{tpu_custom_call.1} parent=1 // pred_fallthru
      _
    // Predicated region
    $region74: #{tpu_custom_call.1} parent=1 // pred_check
      _
    $region75: #{tpu_custom_call.1} parent=1 // pred_check_branch
      %64 = sbr.rel (0) target = $region77
    $region76: #{tpu_custom_call.1} parent=1 // pred_region
      _
    $region77: #{tpu_custom_call.1} parent=1 // pred_fallthru
      _
    // Predicated region
    $region78: #{tpu_custom_call.1} parent=1 // pred_check
      _
    $region79: #{tpu_custom_call.1} parent=1 // pred_check_branch
      %66 = sbr.rel (0) target = $region81
    $region80: #{tpu_custom_call.1} parent=1 // pred_region
      _
    $region81: #{tpu_custom_call.1} parent=1 // pred_fallthru
      _
    // Predicated region
    $region82: #{tpu_custom_call.1} parent=1 // pred_check
      _
    $region83: #{tpu_custom_call.1} parent=1 // pred_check_branch
      %68 = sbr.rel (0) target = $region85
    $region84: #{tpu_custom_call.1} parent=1 // pred_region
      _
    $region85: #{tpu_custom_call.1} parent=1 // pred_fallthru
      _
    %v69 = vld [vmem:[%s0] sm:$0xff]
    %v70 = vld [vmem:[%s1] sm:$0xff]
    %v71 = vld [vmem:[%s2] sm:$0xff]
    %73 = vset.pattern.permute.xlu0 0
    %74 = vperm.xlu0 %73, %v71
    %v75 = vpop.permute.xlu0 %74
    %v77 = vmul.f32 %v70, %v75
    %v78 = vld [vmem:[%s3] sm:$0xff]
    %v79 = vld [vmem:[%s3 + $0x8] sm:$0xff]
    %v80 = vld [vmem:[%s3 + $0x10] sm:$0xff]
    %v81 = vld [vmem:[%s3 + $0x18] sm:$0xff]
    %v82 = vld [vmem:[%s4] sm:$0x1]
    %vm83 = vcmask 64512
    %v85 = vsel %vm83, %v77, 0
    %87 = vmatprep.subr.mxu0 0.0
    %88 = vmatpush1.msra.mxu0 0.0
    %89 = vmatprep.subr.mxu0 0.0
    %90 = vmatpush1.msra.mxu0 0.0
    %91 = vmatprep.subr.mxu0 0.0
    %92 = vmatpush1.msra.mxu0 0.0
    %93 = vmatprep.subr.mxu0 0.0
    %94 = vmatpush1.msra.mxu0 0.0
    %95 = vmatprep.subr.mxu0 0.0
    %96 = vmatpush1.msra.mxu0 0.0
    %97 = vmatprep.subr.mxu0 0.0
    %98 = vmatpush1.msra.mxu0 0.0
    %99 = vmatprep.subr.mxu0 0.0
    %100 = vmatpush1.msra.mxu0 0.0
    %101 = vmatprep.subr.mxu0 0.0
    %102 = vmatpush1.msra.mxu0 0.0
    %103 = vmatprep.subr.mxu0 0.0
    %104 = vmatpush1.msra.mxu0 0.0
    %105 = vmatprep.subr.mxu0 0.0
    %106 = vmatpush1.msra.mxu0 0.0
    %107 = vmatprep.subr.mxu0 0.0
    %108 = vmatpush1.msra.mxu0 0.0
    %109 = vmatprep.subr.mxu0 0.0
    %110 = vmatpush1.msra.mxu0 0.0
    %111 = vmatprep.subr.mxu0 0.0
    %112 = vmatpush1.msra.mxu0 0.0
    %113 = vmatprep.subr.mxu0 0.0
    %114 = vmatpush1.msra.mxu0 0.0
    %115 = vmatprep.subr.mxu0 0.0
    %116 = vmatpush1.msra.mxu0 0.0
    %117 = vmatprep.subr.mxu0 0.0
    %118 = vmatpush1.msra.mxu0 %v69
    %119 = vmatprep.subr.mxu0 0.0
    %120 = vmatpush2.msra.mxu0 0.0
    %121 = vmatprep.subr.mxu0 0.0
    %122 = vmatpush2.msra.mxu0 0.0
    %123 = vmatprep.subr.mxu0 0.0
    %124 = vmatpush2.msra.mxu0 0.0
    %125 = vmatprep.subr.mxu0 0.0
    %126 = vmatpush2.msra.mxu0 0.0
    %127 = vmatprep.subr.mxu0 0.0
    %128 = vmatpush2.msra.mxu0 0.0
    %129 = vmatprep.subr.mxu0 0.0
    %130 = vmatpush2.msra.mxu0 0.0
    %131 = vmatprep.subr.mxu0 0.0
    %132 = vmatpush2.msra.mxu0 0.0
    %133 = vmatprep.subr.mxu0 0.0
    %134 = vmatpush2.msra.mxu0 0.0
    %135 = vmatprep.subr.mxu0 0.0
    %136 = vmatpush2.msra.mxu0 0.0
    %137 = vmatprep.subr.mxu0 0.0
    %138 = vmatpush2.msra.mxu0 0.0
    %139 = vmatprep.subr.mxu0 0.0
    %140 = vmatpush2.msra.mxu0 0.0
    %141 = vmatprep.subr.mxu0 0.0
    %142 = vmatpush2.msra.mxu0 0.0
    %143 = vmatprep.subr.mxu0 0.0
    %144 = vmatpush2.msra.mxu0 0.0
    %145 = vmatprep.subr.mxu0 0.0
    %146 = vmatpush2.msra.mxu0 0.0
    %147 = vmatprep.subr.mxu0 0.0
    %148 = vmatpush2.msra.mxu0 0.0
    %149 = vmatprep.subr.mxu0 0.0
    %150 = vmatpush2.msra.mxu0 0.0
    %151 = vmatprep.mubr.f32.mxu0 0.0
    %152 = vmatmul.mubr.f32.gmra.mxu0 %v85
    %v153 = vpop.f32.mrf.mxu0
    %v154 = vadd.f32 0.0, %v153
    %v155 = vpop.f32.mrf.mxu0
    %156 = vdwg.mxu0
    %158 = vrot.lane.b32.xlu0 %v154, 16
    %v159 = vpop.permute.xlu0 %158
    %vm161 = vcmask 130048
    %v162 = vsel %vm161, %v69, %v159
    %v164 = vlaneseq
    %v165 = vshrl.u32 %v164, 7
    %v166 = vsub.s32 0, %v165
    %v167 = vrot.slane %v82, %v166
    %vm169 = vcmask 261120
    %v171 = vsel %vm169, %v162, 0
    %173 = vmatprep.subr.mxu0 0.0
    %174 = vmatpush1.msra.mxu0 0.0
    %175 = vmatprep.subr.mxu0 0.0
    %176 = vmatpush1.msra.mxu0 0.0
    %177 = vmatprep.subr.mxu0 0.0
    %178 = vmatpush1.msra.mxu0 0.0
    %179 = vmatprep.subr.mxu0 0.0
    %180 = vmatpush1.msra.mxu0 0.0
    %181 = vmatprep.subr.mxu0 0.0
    %182 = vmatpush1.msra.mxu0 0.0
    %183 = vmatprep.subr.mxu0 0.0
    %184 = vmatpush1.msra.mxu0 0.0
    %185 = vmatprep.subr.mxu0 0.0
    %186 = vmatpush1.msra.mxu0 0.0
    %187 = vmatprep.subr.mxu0 0.0
    %188 = vmatpush1.msra.mxu0 0.0
    %189 = vmatprep.subr.mxu0 0.0
    %190 = vmatpush1.msra.mxu0 0.0
    %191 = vmatprep.subr.mxu0 0.0
    %192 = vmatpush1.msra.mxu0 0.0
    %193 = vmatprep.subr.mxu0 0.0
    %194 = vmatpush1.msra.mxu0 0.0
    %195 = vmatprep.subr.mxu0 0.0
    %196 = vmatpush1.msra.mxu0 0.0
    %197 = vmatprep.subr.mxu0 0.0
    %198 = vmatpush1.msra.mxu0 %v81
    %199 = vmatprep.subr.mxu0 0.0
    %200 = vmatpush1.msra.mxu0 %v80
    %201 = vmatprep.subr.mxu0 0.0
    %202 = vmatpush1.msra.mxu0 %v79
    %203 = vmatprep.subr.mxu0 0.0
    %204 = vmatpush1.msra.mxu0 %v78
    %205 = vmatprep.subr.mxu0 0.0
    %206 = vmatpush2.msra.mxu0 0.0
    %207 = vmatprep.subr.mxu0 0.0
    %208 = vmatpush2.msra.mxu0 0.0
    %209 = vmatprep.subr.mxu0 0.0
    %210 = vmatpush2.msra.mxu0 0.0
    %211 = vmatprep.subr.mxu0 0.0
    %212 = vmatpush2.msra.mxu0 0.0
    %213 = vmatprep.subr.mxu0 0.0
    %214 = vmatpush2.msra.mxu0 0.0
    %215 = vmatprep.subr.mxu0 0.0
    %216 = vmatpush2.msra.mxu0 0.0
    %217 = vmatprep.subr.mxu0 0.0
    %218 = vmatpush2.msra.mxu0 0.0
    %219 = vmatprep.subr.mxu0 0.0
    %220 = vmatpush2.msra.mxu0 0.0
    %221 = vmatprep.subr.mxu0 0.0
    %222 = vmatpush2.msra.mxu0 0.0
    %223 = vmatprep.subr.mxu0 0.0
    %224 = vmatpush2.msra.mxu0 0.0
    %225 = vmatprep.subr.mxu0 0.0
    %226 = vmatpush2.msra.mxu0 0.0
    %227 = vmatprep.subr.mxu0 0.0
    %228 = vmatpush2.msra.mxu0 0.0
    %229 = vmatprep.subr.mxu0 0.0
    %230 = vmatpush2.msra.mxu0 0.0
    %231 = vmatprep.subr.mxu0 0.0
    %232 = vmatpush2.msra.mxu0 0.0
    %233 = vmatprep.subr.mxu0 0.0
    %234 = vmatpush2.msra.mxu0 0.0
    %235 = vmatprep.subr.mxu0 0.0
    %236 = vmatpush2.msra.mxu0 0.0
    %237 = vmatprep.mubr.f32.mxu0 0.0
    %238 = vmatmul.mubr.f32.gmra.mxu0 %v171
    %v239 = vpop.f32.mrf.mxu0
    %v240 = vadd.f32 %v167, %v239
    %v241 = vpop.f32.mrf.mxu0
    %242 = vdwg.mxu0
    %v243 = vmax.f32 %v240, 0.0
    %v244 = vld [vmem:[%s5] sm:$0xff]
    %v245 = vld [vmem:[%s5 + $0x8] sm:$0xff]
    %v246 = vld [vmem:[%s5 + $0x10] sm:$0xff]
    %v247 = vld [vmem:[%s5 + $0x18] sm:$0xff]
    %v248 = vld [vmem:[%s5 + $0x20] sm:$0xff]
    %v249 = vld [vmem:[%s5 + $0x28] sm:$0xff]
    %v250 = vld [vmem:[%s5 + $0x30] sm:$0xff]
    %v251 = vld [vmem:[%s5 + $0x38] sm:$0xff]
    %v252 = vld [vmem:[%s5 + $0x40] sm:$0xff]
    %v253 = vld [vmem:[%s5 + $0x48] sm:$0xff]
    %v254 = vld [vmem:[%s5 + $0x50] sm:$0xff]
    %v255 = vld [vmem:[%s5 + $0x58] sm:$0xff]
    %v256 = vld [vmem:[%s5 + $0x60] sm:$0xff]
    %v257 = vld [vmem:[%s5 + $0x68] sm:$0xff]
    %v258 = vld [vmem:[%s5 + $0x70] sm:$0xff]
    %v259 = vld [vmem:[%s5 + $0x78] sm:$0xff]
    %v260 = vld [vmem:[%s5 + $0x80] sm:$0xff]
    %v261 = vld [vmem:[%s5 + $0x88] sm:$0xff]
    %v262 = vld [vmem:[%s5 + $0x90] sm:$0xff]
    %v263 = vld [vmem:[%s5 + $0x98] sm:$0xff]
    %v264 = vld [vmem:[%s5 + $0xa0] sm:$0xff]
    %v265 = vld [vmem:[%s5 + $0xa8] sm:$0xff]
    %v266 = vld [vmem:[%s5 + $0xb0] sm:$0xff]
    %v267 = vld [vmem:[%s5 + $0xb8] sm:$0xff]
    %v268 = vld [vmem:[%s5 + $0xc0] sm:$0xff]
    %v269 = vld [vmem:[%s5 + $0xc8] sm:$0xff]
    %v270 = vld [vmem:[%s5 + $0xd0] sm:$0xff]
    %v271 = vld [vmem:[%s5 + $0xd8] sm:$0xff]
    %v272 = vld [vmem:[%s5 + $0xe0] sm:$0xff]
    %v273 = vld [vmem:[%s5 + $0xe8] sm:$0xff]
    %v274 = vld [vmem:[%s5 + $0xf0] sm:$0xff]
    %v275 = vld [vmem:[%s5 + $0xf8] sm:$0xff]
    %v276 = vld [vmem:[%s6] sm:$0x1]
    %277 = vmatprep.subr.mxu0 0.0
    %278 = vmatpush1.msra.mxu0 0.0
    %279 = vmatprep.subr.mxu0 0.0
    %280 = vmatpush1.msra.mxu0 0.0
    %281 = vmatprep.subr.mxu0 0.0
    %282 = vmatpush1.msra.mxu0 0.0
    %283 = vmatprep.subr.mxu0 0.0
    %284 = vmatpush1.msra.mxu0 0.0
    %285 = vmatprep.subr.mxu0 0.0
    %286 = vmatpush1.msra.mxu0 0.0
    %287 = vmatprep.subr.mxu0 0.0
    %288 = vmatpush1.msra.mxu0 0.0
    %289 = vmatprep.subr.mxu0 0.0
    %290 = vmatpush1.msra.mxu0 0.0
    %291 = vmatprep.subr.mxu0 0.0
    %292 = vmatpush1.msra.mxu0 0.0
    %293 = vmatprep.subr.mxu0 0.0
    %294 = vmatpush1.msra.mxu0 0.0
    %295 = vmatprep.subr.mxu0 0.0
    %296 = vmatpush1.msra.mxu0 0.0
    %297 = vmatprep.subr.mxu0 0.0
    %298 = vmatpush1.msra.mxu0 0.0
    %299 = vmatprep.subr.mxu0 0.0
    %300 = vmatpush1.msra.mxu0 0.0
    %301 = vmatprep.subr.mxu0 0.0
    %302 = vmatpush1.msra.mxu0 0.0
    %303 = vmatprep.subr.mxu0 0.0
    %304 = vmatpush1.msra.mxu0 0.0
    %305 = vmatprep.subr.mxu0 0.0
    %306 = vmatpush1.msra.mxu0 0.0
    %307 = vmatprep.subr.mxu0 0.0
    %308 = vmatpush1.msra.mxu0 %v243
    %309 = vmatprep.subr.mxu0 0.0
    %310 = vmatpush2.msra.mxu0 0.0
    %311 = vmatprep.subr.mxu0 0.0
    %312 = vmatpush2.msra.mxu0 0.0
    %313 = vmatprep.subr.mxu0 0.0
    %314 = vmatpush2.msra.mxu0 0.0
    %315 = vmatprep.subr.mxu0 0.0
    %316 = vmatpush2.msra.mxu0 0.0
    %317 = vmatprep.subr.mxu0 0.0
    %318 = vmatpush2.msra.mxu0 0.0
    %319 = vmatprep.subr.mxu0 0.0
    %320 = vmatpush2.msra.mxu0 0.0
    %321 = vmatprep.subr.mxu0 0.0
    %322 = vmatpush2.msra.mxu0 0.0
    %323 = vmatprep.subr.mxu0 0.0
    %324 = vmatpush2.msra.mxu0 0.0
    %325 = vmatprep.subr.mxu0 0.0
    %326 = vmatpush2.msra.mxu0 0.0
    %327 = vmatprep.subr.mxu0 0.0
    %328 = vmatpush2.msra.mxu0 0.0
    %329 = vmatprep.subr.mxu0 0.0
    %330 = vmatpush2.msra.mxu0 0.0
    %331 = vmatprep.subr.mxu0 0.0
    %332 = vmatpush2.msra.mxu0 0.0
    %333 = vmatprep.subr.mxu0 0.0
    %334 = vmatpush2.msra.mxu0 0.0
    %335 = vmatprep.subr.mxu0 0.0
    %336 = vmatpush2.msra.mxu0 0.0
    %337 = vmatprep.subr.mxu0 0.0
    %338 = vmatpush2.msra.mxu0 0.0
    %339 = vmatprep.subr.mxu0 0.0
    %340 = vmatpush2.msra.mxu0 0.0
    %341 = vmatprep.mubr.f32.mxu0 0.0
    %342 = vmatmul.mubr.f32.gmra.mxu0 %v85
    %v343 = vpop.f32.mrf.mxu0
    %v344 = vadd.f32 0.0, %v343
    %v345 = vpop.f32.mrf.mxu0
    %346 = vdwg.mxu0
    %v348 = vlaneseq
    %v349 = vshrl.u32 %v348, 7
    %v350 = vsub.s32 0, %v349
    %v351 = vrot.slane %v276, %v350
    %353 = vmatprep.subr.mxu0 0.0
    %354 = vmatpush1.msra.mxu0 %v259
    %355 = vmatprep.subr.mxu0 0.0
    %356 = vmatpush1.msra.mxu0 %v258
    %357 = vmatprep.subr.mxu0 0.0
    %358 = vmatpush1.msra.mxu0 %v257
    %359 = vmatprep.subr.mxu0 0.0
    %360 = vmatpush1.msra.mxu0 %v256
    %361 = vmatprep.subr.mxu0 0.0
    %362 = vmatpush1.msra.mxu0 %v255
    %363 = vmatprep.subr.mxu0 0.0
    %364 = vmatpush1.msra.mxu0 %v254
    %365 = vmatprep.subr.mxu0 0.0
    %366 = vmatpush1.msra.mxu0 %v253
    %367 = vmatprep.subr.mxu0 0.0
    %368 = vmatpush1.msra.mxu0 %v252
    %369 = vmatprep.subr.mxu0 0.0
    %370 = vmatpush1.msra.mxu0 %v251
    %371 = vmatprep.subr.mxu0 0.0
    %372 = vmatpush1.msra.mxu0 %v250
    %373 = vmatprep.subr.mxu0 0.0
    %374 = vmatpush1.msra.mxu0 %v249
    %375 = vmatprep.subr.mxu0 0.0
    %376 = vmatpush1.msra.mxu0 %v248
    %377 = vmatprep.subr.mxu0 0.0
    %378 = vmatpush1.msra.mxu0 %v247
    %379 = vmatprep.subr.mxu0 0.0
    %380 = vmatpush1.msra.mxu0 %v246
    %381 = vmatprep.subr.mxu0 0.0
    %382 = vmatpush1.msra.mxu0 %v245
    %383 = vmatprep.subr.mxu0 0.0
    %384 = vmatpush1.msra.mxu0 %v244
    %385 = vmatprep.subr.mxu0 0.0
    %386 = vmatpush2.msra.mxu0 %v275
    %387 = vmatprep.subr.mxu0 0.0
    %388 = vmatpush2.msra.mxu0 %v274
    %389 = vmatprep.subr.mxu0 0.0
    %390 = vmatpush2.msra.mxu0 %v273
    %391 = vmatprep.subr.mxu0 0.0
    %392 = vmatpush2.msra.mxu0 %v272
    %393 = vmatprep.subr.mxu0 0.0
    %394 = vmatpush2.msra.mxu0 %v271
    %395 = vmatprep.subr.mxu0 0.0
    %396 = vmatpush2.msra.mxu0 %v270
    %397 = vmatprep.subr.mxu0 0.0
    %398 = vmatpush2.msra.mxu0 %v269
    %399 = vmatprep.subr.mxu0 0.0
    %400 = vmatpush2.msra.mxu0 %v268
    %401 = vmatprep.subr.mxu0 0.0
    %402 = vmatpush2.msra.mxu0 %v267
    %403 = vmatprep.subr.mxu0 0.0
    %404 = vmatpush2.msra.mxu0 %v266
    %405 = vmatprep.subr.mxu0 0.0
    %406 = vmatpush2.msra.mxu0 %v265
    %407 = vmatprep.subr.mxu0 0.0
    %408 = vmatpush2.msra.mxu0 %v264
    %409 = vmatprep.subr.mxu0 0.0
    %410 = vmatpush2.msra.mxu0 %v263
    %411 = vmatprep.subr.mxu0 0.0
    %412 = vmatpush2.msra.mxu0 %v262
    %413 = vmatprep.subr.mxu0 0.0
    %414 = vmatpush2.msra.mxu0 %v261
    %415 = vmatprep.subr.mxu0 0.0
    %416 = vmatpush2.msra.mxu0 %v260
    %417 = vmatprep.mubr.f32.mxu0 %v344
    %418 = vmatmul.mubr.f32.gmra.mxu0 %v243
    %v419 = vpop.f32.mrf.mxu0
    %v420 = vadd.f32 %v351, %v419
    %v421 = vpop.f32.mrf.mxu0
    %422 = vdwg.mxu0
    %v423 = vld [vmem:[%s7] sm:$0xff]
    %v424 = vld [vmem:[%s8] sm:$0xff]
    %426 = vset.pattern.permute.xlu0 0
    %427 = vperm.xlu0 %426, %v424
    %v428 = vpop.permute.xlu0 %427
    %v430 = vmul.f32 %v423, %v428
    %v431 = vld [vmem:[%s9] sm:$0xff]
    %v432 = vld [vmem:[%s9 + $0x8] sm:$0xff]
    %v433 = vld [vmem:[%s9 + $0x10] sm:$0xff]
    %v434 = vld [vmem:[%s9 + $0x18] sm:$0xff]
    %v435 = vld [vmem:[%s10] sm:$0x1]
    %v437 = vsel %vm83, %v430, 0
    %439 = vmatprep.subr.mxu0 0.0
    %440 = vmatpush1.msra.mxu0 0.0
    %441 = vmatprep.subr.mxu0 0.0
    %442 = vmatpush1.msra.mxu0 0.0
    %443 = vmatprep.subr.mxu0 0.0
    %444 = vmatpush1.msra.mxu0 0.0
    %445 = vmatprep.subr.mxu0 0.0
    %446 = vmatpush1.msra.mxu0 0.0
    %447 = vmatprep.subr.mxu0 0.0
    %448 = vmatpush1.msra.mxu0 0.0
    %449 = vmatprep.subr.mxu0 0.0
    %450 = vmatpush1.msra.mxu0 0.0
    %451 = vmatprep.subr.mxu0 0.0
    %452 = vmatpush1.msra.mxu0 0.0
    %453 = vmatprep.subr.mxu0 0.0
    %454 = vmatpush1.msra.mxu0 0.0
    %455 = vmatprep.subr.mxu0 0.0
    %456 = vmatpush1.msra.mxu0 0.0
    %457 = vmatprep.subr.mxu0 0.0
    %458 = vmatpush1.msra.mxu0 0.0
    %459 = vmatprep.subr.mxu0 0.0
    %460 = vmatpush1.msra.mxu0 0.0
    %461 = vmatprep.subr.mxu0 0.0
    %462 = vmatpush1.msra.mxu0 0.0
    %463 = vmatprep.subr.mxu0 0.0
    %464 = vmatpush1.msra.mxu0 0.0
    %465 = vmatprep.subr.mxu0 0.0
    %466 = vmatpush1.msra.mxu0 0.0
    %467 = vmatprep.subr.mxu0 0.0
    %468 = vmatpush1.msra.mxu0 0.0
    %469 = vmatprep.subr.mxu0 0.0
    %470 = vmatpush1.msra.mxu0 %v69
    %471 = vmatprep.subr.mxu0 0.0
    %472 = vmatpush2.msra.mxu0 0.0
    %473 = vmatprep.subr.mxu0 0.0
    %474 = vmatpush2.msra.mxu0 0.0
    %475 = vmatprep.subr.mxu0 0.0
    %476 = vmatpush2.msra.mxu0 0.0
    %477 = vmatprep.subr.mxu0 0.0
    %478 = vmatpush2.msra.mxu0 0.0
    %479 = vmatprep.subr.mxu0 0.0
    %480 = vmatpush2.msra.mxu0 0.0
    %481 = vmatprep.subr.mxu0 0.0
    %482 = vmatpush2.msra.mxu0 0.0
    %483 = vmatprep.subr.mxu0 0.0
    %484 = vmatpush2.msra.mxu0 0.0
    %485 = vmatprep.subr.mxu0 0.0
    %486 = vmatpush2.msra.mxu0 0.0
    %487 = vmatprep.subr.mxu0 0.0
    %488 = vmatpush2.msra.mxu0 0.0
    %489 = vmatprep.subr.mxu0 0.0
    %490 = vmatpush2.msra.mxu0 0.0
    %491 = vmatprep.subr.mxu0 0.0
    %492 = vmatpush2.msra.mxu0 0.0
    %493 = vmatprep.subr.mxu0 0.0
    %494 = vmatpush2.msra.mxu0 0.0
    %495 = vmatprep.subr.mxu0 0.0
    %496 = vmatpush2.msra.mxu0 0.0
    %497 = vmatprep.subr.mxu0 0.0
    %498 = vmatpush2.msra.mxu0 0.0
    %499 = vmatprep.subr.mxu0 0.0
    %500 = vmatpush2.msra.mxu0 0.0
    %501 = vmatprep.subr.mxu0 0.0
    %502 = vmatpush2.msra.mxu0 0.0
    %503 = vmatprep.mubr.f32.mxu0 0.0
    %504 = vmatmul.mubr.f32.gmra.mxu0 %v437
    %v505 = vpop.f32.mrf.mxu0
    %v506 = vadd.f32 0.0, %v505
    %v507 = vpop.f32.mrf.mxu0
    %508 = vdwg.mxu0
    %510 = vrot.lane.b32.xlu0 %v506, 16
    %v511 = vpop.permute.xlu0 %510
    %v513 = vsel %vm161, %v69, %v511
    %v515 = vlaneseq
    %v516 = vshrl.u32 %v515, 7
    %v517 = vsub.s32 0, %v516
    %v518 = vrot.slane %v435, %v517
    %v521 = vsel %vm169, %v513, 0
    %523 = vmatprep.subr.mxu0 0.0
    %524 = vmatpush1.msra.mxu0 0.0
    %525 = vmatprep.subr.mxu0 0.0
    %526 = vmatpush1.msra.mxu0 0.0
    %527 = vmatprep.subr.mxu0 0.0
    %528 = vmatpush1.msra.mxu0 0.0
    %529 = vmatprep.subr.mxu0 0.0
    %530 = vmatpush1.msra.mxu0 0.0
    %531 = vmatprep.subr.mxu0 0.0
    %532 = vmatpush1.msra.mxu0 0.0
    %533 = vmatprep.subr.mxu0 0.0
    %534 = vmatpush1.msra.mxu0 0.0
    %535 = vmatprep.subr.mxu0 0.0
    %536 = vmatpush1.msra.mxu0 0.0
    %537 = vmatprep.subr.mxu0 0.0
    %538 = vmatpush1.msra.mxu0 0.0
    %539 = vmatprep.subr.mxu0 0.0
    %540 = vmatpush1.msra.mxu0 0.0
    %541 = vmatprep.subr.mxu0 0.0
    %542 = vmatpush1.msra.mxu0 0.0
    %543 = vmatprep.subr.mxu0 0.0
    %544 = vmatpush1.msra.mxu0 0.0
    %545 = vmatprep.subr.mxu0 0.0
    %546 = vmatpush1.msra.mxu0 0.0
    %547 = vmatprep.subr.mxu0 0.0
    %548 = vmatpush1.msra.mxu0 %v434
    %549 = vmatprep.subr.mxu0 0.0
    %550 = vmatpush1.msra.mxu0 %v433
    %551 = vmatprep.subr.mxu0 0.0
    %552 = vmatpush1.msra.mxu0 %v432
    %553 = vmatprep.subr.mxu0 0.0
    %554 = vmatpush1.msra.mxu0 %v431
    %555 = vmatprep.subr.mxu0 0.0
    %556 = vmatpush2.msra.mxu0 0.0
    %557 = vmatprep.subr.mxu0 0.0
    %558 = vmatpush2.msra.mxu0 0.0
    %559 = vmatprep.subr.mxu0 0.0
    %560 = vmatpush2.msra.mxu0 0.0
    %561 = vmatprep.subr.mxu0 0.0
    %562 = vmatpush2.msra.mxu0 0.0
    %563 = vmatprep.subr.mxu0 0.0
    %564 = vmatpush2.msra.mxu0 0.0
    %565 = vmatprep.subr.mxu0 0.0
    %566 = vmatpush2.msra.mxu0 0.0
    %567 = vmatprep.subr.mxu0 0.0
    %568 = vmatpush2.msra.mxu0 0.0
    %569 = vmatprep.subr.mxu0 0.0
    %570 = vmatpush2.msra.mxu0 0.0
    %571 = vmatprep.subr.mxu0 0.0
    %572 = vmatpush2.msra.mxu0 0.0
    %573 = vmatprep.subr.mxu0 0.0
    %574 = vmatpush2.msra.mxu0 0.0
    %575 = vmatprep.subr.mxu0 0.0
    %576 = vmatpush2.msra.mxu0 0.0
    %577 = vmatprep.subr.mxu0 0.0
    %578 = vmatpush2.msra.mxu0 0.0
    %579 = vmatprep.subr.mxu0 0.0
    %580 = vmatpush2.msra.mxu0 0.0
    %581 = vmatprep.subr.mxu0 0.0
    %582 = vmatpush2.msra.mxu0 0.0
    %583 = vmatprep.subr.mxu0 0.0
    %584 = vmatpush2.msra.mxu0 0.0
    %585 = vmatprep.subr.mxu0 0.0
    %586 = vmatpush2.msra.mxu0 0.0
    %587 = vmatprep.mubr.f32.mxu0 0.0
    %588 = vmatmul.mubr.f32.gmra.mxu0 %v521
    %v589 = vpop.f32.mrf.mxu0
    %v590 = vadd.f32 %v518, %v589
    %v591 = vpop.f32.mrf.mxu0
    %592 = vdwg.mxu0
    %v593 = vmax.f32 %v590, 0.0
    %v594 = vld [vmem:[%s11] sm:$0xff]
    %v595 = vld [vmem:[%s11 + $0x8] sm:$0xff]
    %v596 = vld [vmem:[%s11 + $0x10] sm:$0xff]
    %v597 = vld [vmem:[%s11 + $0x18] sm:$0xff]
    %v598 = vld [vmem:[%s11 + $0x20] sm:$0xff]
    %v599 = vld [vmem:[%s11 + $0x28] sm:$0xff]
    %v600 = vld [vmem:[%s11 + $0x30] sm:$0xff]
    %v601 = vld [vmem:[%s11 + $0x38] sm:$0xff]
    %v602 = vld [vmem:[%s11 + $0x40] sm:$0xff]
    %v603 = vld [vmem:[%s11 + $0x48] sm:$0xff]
    %v604 = vld [vmem:[%s11 + $0x50] sm:$0xff]
    %v605 = vld [vmem:[%s11 + $0x58] sm:$0xff]
    %v606 = vld [vmem:[%s11 + $0x60] sm:$0xff]
    %v607 = vld [vmem:[%s11 + $0x68] sm:$0xff]
    %v608 = vld [vmem:[%s11 + $0x70] sm:$0xff]
    %v609 = vld [vmem:[%s11 + $0x78] sm:$0xff]
    %v610 = vld [vmem:[%s11 + $0x80] sm:$0xff]
    %v611 = vld [vmem:[%s11 + $0x88] sm:$0xff]
    %v612 = vld [vmem:[%s11 + $0x90] sm:$0xff]
    %v613 = vld [vmem:[%s11 + $0x98] sm:$0xff]
    %v614 = vld [vmem:[%s11 + $0xa0] sm:$0xff]
    %v615 = vld [vmem:[%s11 + $0xa8] sm:$0xff]
    %v616 = vld [vmem:[%s11 + $0xb0] sm:$0xff]
    %v617 = vld [vmem:[%s11 + $0xb8] sm:$0xff]
    %v618 = vld [vmem:[%s11 + $0xc0] sm:$0xff]
    %v619 = vld [vmem:[%s11 + $0xc8] sm:$0xff]
    %v620 = vld [vmem:[%s11 + $0xd0] sm:$0xff]
    %v621 = vld [vmem:[%s11 + $0xd8] sm:$0xff]
    %v622 = vld [vmem:[%s11 + $0xe0] sm:$0xff]
    %v623 = vld [vmem:[%s11 + $0xe8] sm:$0xff]
    %v624 = vld [vmem:[%s11 + $0xf0] sm:$0xff]
    %v625 = vld [vmem:[%s11 + $0xf8] sm:$0xff]
    %v626 = vld [vmem:[%s12] sm:$0x1]
    %627 = vmatprep.subr.mxu0 0.0
    %628 = vmatpush1.msra.mxu0 0.0
    %629 = vmatprep.subr.mxu0 0.0
    %630 = vmatpush1.msra.mxu0 0.0
    %631 = vmatprep.subr.mxu0 0.0
    %632 = vmatpush1.msra.mxu0 0.0
    %633 = vmatprep.subr.mxu0 0.0
    %634 = vmatpush1.msra.mxu0 0.0
    %635 = vmatprep.subr.mxu0 0.0
    %636 = vmatpush1.msra.mxu0 0.0
    %637 = vmatprep.subr.mxu0 0.0
    %638 = vmatpush1.msra.mxu0 0.0
    %639 = vmatprep.subr.mxu0 0.0
    %640 = vmatpush1.msra.mxu0 0.0
    %641 = vmatprep.subr.mxu0 0.0
    %642 = vmatpush1.msra.mxu0 0.0
    %643 = vmatprep.subr.mxu0 0.0
    %644 = vmatpush1.msra.mxu0 0.0
    %645 = vmatprep.subr.mxu0 0.0
    %646 = vmatpush1.msra.mxu0 0.0
    %647 = vmatprep.subr.mxu0 0.0
    %648 = vmatpush1.msra.mxu0 0.0
    %649 = vmatprep.subr.mxu0 0.0
    %650 = vmatpush1.msra.mxu0 0.0
    %651 = vmatprep.subr.mxu0 0.0
    %652 = vmatpush1.msra.mxu0 0.0
    %653 = vmatprep.subr.mxu0 0.0
    %654 = vmatpush1.msra.mxu0 0.0
    %655 = vmatprep.subr.mxu0 0.0
    %656 = vmatpush1.msra.mxu0 0.0
    %657 = vmatprep.subr.mxu0 0.0
    %658 = vmatpush1.msra.mxu0 %v593
    %659 = vmatprep.subr.mxu0 0.0
    %660 = vmatpush2.msra.mxu0 0.0
    %661 = vmatprep.subr.mxu0 0.0
    %662 = vmatpush2.msra.mxu0 0.0
    %663 = vmatprep.subr.mxu0 0.0
    %664 = vmatpush2.msra.mxu0 0.0
    %665 = vmatprep.subr.mxu0 0.0
    %666 = vmatpush2.msra.mxu0 0.0
    %667 = vmatprep.subr.mxu0 0.0
    %668 = vmatpush2.msra.mxu0 0.0
    %669 = vmatprep.subr.mxu0 0.0
    %670 = vmatpush2.msra.mxu0 0.0
    %671 = vmatprep.subr.mxu0 0.0
    %672 = vmatpush2.msra.mxu0 0.0
    %673 = vmatprep.subr.mxu0 0.0
    %674 = vmatpush2.msra.mxu0 0.0
    %675 = vmatprep.subr.mxu0 0.0
    %676 = vmatpush2.msra.mxu0 0.0
    %677 = vmatprep.subr.mxu0 0.0
    %678 = vmatpush2.msra.mxu0 0.0
    %679 = vmatprep.subr.mxu0 0.0
    %680 = vmatpush2.msra.mxu0 0.0
    %681 = vmatprep.subr.mxu0 0.0
    %682 = vmatpush2.msra.mxu0 0.0
    %683 = vmatprep.subr.mxu0 0.0
    %684 = vmatpush2.msra.mxu0 0.0
    %685 = vmatprep.subr.mxu0 0.0
    %686 = vmatpush2.msra.mxu0 0.0
    %687 = vmatprep.subr.mxu0 0.0
    %688 = vmatpush2.msra.mxu0 0.0
    %689 = vmatprep.subr.mxu0 0.0
    %690 = vmatpush2.msra.mxu0 0.0
    %691 = vmatprep.mubr.f32.mxu0 0.0
    %692 = vmatmul.mubr.f32.gmra.mxu0 %v437
    %v693 = vpop.f32.mrf.mxu0
    %v694 = vadd.f32 0.0, %v693
    %v695 = vpop.f32.mrf.mxu0
    %696 = vdwg.mxu0
    %v698 = vlaneseq
    %v699 = vshrl.u32 %v698, 7
    %v700 = vsub.s32 0, %v699
    %v701 = vrot.slane %v626, %v700
    %703 = vmatprep.subr.mxu0 0.0
    %704 = vmatpush1.msra.mxu0 %v609
    %705 = vmatprep.subr.mxu0 0.0
    %706 = vmatpush1.msra.mxu0 %v608
    %707 = vmatprep.subr.mxu0 0.0
    %708 = vmatpush1.msra.mxu0 %v607
    %709 = vmatprep.subr.mxu0 0.0
    %710 = vmatpush1.msra.mxu0 %v606
    %711 = vmatprep.subr.mxu0 0.0
    %712 = vmatpush1.msra.mxu0 %v605
    %713 = vmatprep.subr.mxu0 0.0
    %714 = vmatpush1.msra.mxu0 %v604
    %715 = vmatprep.subr.mxu0 0.0
    %716 = vmatpush1.msra.mxu0 %v603
    %717 = vmatprep.subr.mxu0 0.0
    %718 = vmatpush1.msra.mxu0 %v602
    %719 = vmatprep.subr.mxu0 0.0
    %720 = vmatpush1.msra.mxu0 %v601
    %721 = vmatprep.subr.mxu0 0.0
    %722 = vmatpush1.msra.mxu0 %v600
    %723 = vmatprep.subr.mxu0 0.0
    %724 = vmatpush1.msra.mxu0 %v599
    %725 = vmatprep.subr.mxu0 0.0
    %726 = vmatpush1.msra.mxu0 %v598
    %727 = vmatprep.subr.mxu0 0.0
    %728 = vmatpush1.msra.mxu0 %v597
    %729 = vmatprep.subr.mxu0 0.0
    %730 = vmatpush1.msra.mxu0 %v596
    %731 = vmatprep.subr.mxu0 0.0
    %732 = vmatpush1.msra.mxu0 %v595
    %733 = vmatprep.subr.mxu0 0.0
    %734 = vmatpush1.msra.mxu0 %v594
    %735 = vmatprep.subr.mxu0 0.0
    %736 = vmatpush2.msra.mxu0 %v625
    %737 = vmatprep.subr.mxu0 0.0
    %738 = vmatpush2.msra.mxu0 %v624
    %739 = vmatprep.subr.mxu0 0.0
    %740 = vmatpush2.msra.mxu0 %v623
    %741 = vmatprep.subr.mxu0 0.0
    %742 = vmatpush2.msra.mxu0 %v622
    %743 = vmatprep.subr.mxu0 0.0
    %744 = vmatpush2.msra.mxu0 %v621
    %745 = vmatprep.subr.mxu0 0.0
    %746 = vmatpush2.msra.mxu0 %v620
    %747 = vmatprep.subr.mxu0 0.0
    %748 = vmatpush2.msra.mxu0 %v619
    %749 = vmatprep.subr.mxu0 0.0
    %750 = vmatpush2.msra.mxu0 %v618
    %751 = vmatprep.subr.mxu0 0.0
    %752 = vmatpush2.msra.mxu0 %v617
    %753 = vmatprep.subr.mxu0 0.0
    %754 = vmatpush2.msra.mxu0 %v616
    %755 = vmatprep.subr.mxu0 0.0
    %756 = vmatpush2.msra.mxu0 %v615
    %757 = vmatprep.subr.mxu0 0.0
    %758 = vmatpush2.msra.mxu0 %v614
    %759 = vmatprep.subr.mxu0 0.0
    %760 = vmatpush2.msra.mxu0 %v613
    %761 = vmatprep.subr.mxu0 0.0
    %762 = vmatpush2.msra.mxu0 %v612
    %763 = vmatprep.subr.mxu0 0.0
    %764 = vmatpush2.msra.mxu0 %v611
    %765 = vmatprep.subr.mxu0 0.0
    %766 = vmatpush2.msra.mxu0 %v610
    %767 = vmatprep.mubr.f32.mxu0 %v694
    %768 = vmatmul.mubr.f32.gmra.mxu0 %v593
    %v769 = vpop.f32.mrf.mxu0
    %v770 = vadd.f32 %v701, %v769
    %v771 = vpop.f32.mrf.mxu0
    %772 = vdwg.mxu0
    %v773 = vld [vmem:[%s13] sm:$0xff]
    %v774 = vld [vmem:[%s14] sm:$0xff]
    %776 = vset.pattern.permute.xlu0 0
    %777 = vperm.xlu0 %776, %v774
    %v778 = vpop.permute.xlu0 %777
    %v780 = vmul.f32 %v773, %v778
    %v781 = vld [vmem:[%s15] sm:$0xff]
    %v782 = vld [vmem:[%s15 + $0x8] sm:$0xff]
    %v783 = vld [vmem:[%s15 + $0x10] sm:$0xff]
    %v784 = vld [vmem:[%s15 + $0x18] sm:$0xff]
    %v785 = vld [vmem:[%s16] sm:$0x1]
    %v787 = vsel %vm83, %v780, 0
    %789 = vmatprep.subr.mxu0 0.0
    %790 = vmatpush1.msra.mxu0 0.0
    %791 = vmatprep.subr.mxu0 0.0
    %792 = vmatpush1.msra.mxu0 0.0
    %793 = vmatprep.subr.mxu0 0.0
    %794 = vmatpush1.msra.mxu0 0.0
    %795 = vmatprep.subr.mxu0 0.0
    %796 = vmatpush1.msra.mxu0 0.0
    %797 = vmatprep.subr.mxu0 0.0
    %798 = vmatpush1.msra.mxu0 0.0
    %799 = vmatprep.subr.mxu0 0.0
    %800 = vmatpush1.msra.mxu0 0.0
    %801 = vmatprep.subr.mxu0 0.0
    %802 = vmatpush1.msra.mxu0 0.0
    %803 = vmatprep.subr.mxu0 0.0
    %804 = vmatpush1.msra.mxu0 0.0
    %805 = vmatprep.subr.mxu0 0.0
    %806 = vmatpush1.msra.mxu0 0.0
    %807 = vmatprep.subr.mxu0 0.0
    %808 = vmatpush1.msra.mxu0 0.0
    %809 = vmatprep.subr.mxu0 0.0
    %810 = vmatpush1.msra.mxu0 0.0
    %811 = vmatprep.subr.mxu0 0.0
    %812 = vmatpush1.msra.mxu0 0.0
    %813 = vmatprep.subr.mxu0 0.0
    %814 = vmatpush1.msra.mxu0 0.0
    %815 = vmatprep.subr.mxu0 0.0
    %816 = vmatpush1.msra.mxu0 0.0
    %817 = vmatprep.subr.mxu0 0.0
    %818 = vmatpush1.msra.mxu0 0.0
    %819 = vmatprep.subr.mxu0 0.0
    %820 = vmatpush1.msra.mxu0 %v69
    %821 = vmatprep.subr.mxu0 0.0
    %822 = vmatpush2.msra.mxu0 0.0
    %823 = vmatprep.subr.mxu0 0.0
    %824 = vmatpush2.msra.mxu0 0.0
    %825 = vmatprep.subr.mxu0 0.0
    %826 = vmatpush2.msra.mxu0 0.0
    %827 = vmatprep.subr.mxu0 0.0
    %828 = vmatpush2.msra.mxu0 0.0
    %829 = vmatprep.subr.mxu0 0.0
    %830 = vmatpush2.msra.mxu0 0.0
    %831 = vmatprep.subr.mxu0 0.0
    %832 = vmatpush2.msra.mxu0 0.0
    %833 = vmatprep.subr.mxu0 0.0
    %834 = vmatpush2.msra.mxu0 0.0
    %835 = vmatprep.subr.mxu0 0.0
    %836 = vmatpush2.msra.mxu0 0.0
    %837 = vmatprep.subr.mxu0 0.0
    %838 = vmatpush2.msra.mxu0 0.0
    %839 = vmatprep.subr.mxu0 0.0
    %840 = vmatpush2.msra.mxu0 0.0
    %841 = vmatprep.subr.mxu0 0.0
    %842 = vmatpush2.msra.mxu0 0.0
    %843 = vmatprep.subr.mxu0 0.0
    %844 = vmatpush2.msra.mxu0 0.0
    %845 = vmatprep.subr.mxu0 0.0
    %846 = vmatpush2.msra.mxu0 0.0
    %847 = vmatprep.subr.mxu0 0.0
    %848 = vmatpush2.msra.mxu0 0.0
    %849 = vmatprep.subr.mxu0 0.0
    %850 = vmatpush2.msra.mxu0 0.0
    %851 = vmatprep.subr.mxu0 0.0
    %852 = vmatpush2.msra.mxu0 0.0
    %853 = vmatprep.mubr.f32.mxu0 0.0
    %854 = vmatmul.mubr.f32.gmra.mxu0 %v787
    %v855 = vpop.f32.mrf.mxu0
    %v856 = vadd.f32 0.0, %v855
    %v857 = vpop.f32.mrf.mxu0
    %858 = vdwg.mxu0
    %860 = vrot.lane.b32.xlu0 %v856, 16
    %v861 = vpop.permute.xlu0 %860
    %v863 = vsel %vm161, %v69, %v861
    %v865 = vlaneseq
    %v866 = vshrl.u32 %v865, 7
    %v867 = vsub.s32 0, %v866
    %v868 = vrot.slane %v785, %v867
    %v871 = vsel %vm169, %v863, 0
    %873 = vmatprep.subr.mxu0 0.0
    %874 = vmatpush1.msra.mxu0 0.0
    %875 = vmatprep.subr.mxu0 0.0
    %876 = vmatpush1.msra.mxu0 0.0
    %877 = vmatprep.subr.mxu0 0.0
    %878 = vmatpush1.msra.mxu0 0.0
    %879 = vmatprep.subr.mxu0 0.0
    %880 = vmatpush1.msra.mxu0 0.0
    %881 = vmatprep.subr.mxu0 0.0
    %882 = vmatpush1.msra.mxu0 0.0
    %883 = vmatprep.subr.mxu0 0.0
    %884 = vmatpush1.msra.mxu0 0.0
    %885 = vmatprep.subr.mxu0 0.0
    %886 = vmatpush1.msra.mxu0 0.0
    %887 = vmatprep.subr.mxu0 0.0
    %888 = vmatpush1.msra.mxu0 0.0
    %889 = vmatprep.subr.mxu0 0.0
    %890 = vmatpush1.msra.mxu0 0.0
    %891 = vmatprep.subr.mxu0 0.0
    %892 = vmatpush1.msra.mxu0 0.0
    %893 = vmatprep.subr.mxu0 0.0
    %894 = vmatpush1.msra.mxu0 0.0
    %895 = vmatprep.subr.mxu0 0.0
    %896 = vmatpush1.msra.mxu0 0.0
    %897 = vmatprep.subr.mxu0 0.0
    %898 = vmatpush1.msra.mxu0 %v784
    %899 = vmatprep.subr.mxu0 0.0
    %900 = vmatpush1.msra.mxu0 %v783
    %901 = vmatprep.subr.mxu0 0.0
    %902 = vmatpush1.msra.mxu0 %v782
    %903 = vmatprep.subr.mxu0 0.0
    %904 = vmatpush1.msra.mxu0 %v781
    %905 = vmatprep.subr.mxu0 0.0
    %906 = vmatpush2.msra.mxu0 0.0
    %907 = vmatprep.subr.mxu0 0.0
    %908 = vmatpush2.msra.mxu0 0.0
    %909 = vmatprep.subr.mxu0 0.0
    %910 = vmatpush2.msra.mxu0 0.0
    %911 = vmatprep.subr.mxu0 0.0
    %912 = vmatpush2.msra.mxu0 0.0
    %913 = vmatprep.subr.mxu0 0.0
    %914 = vmatpush2.msra.mxu0 0.0
    %915 = vmatprep.subr.mxu0 0.0
    %916 = vmatpush2.msra.mxu0 0.0
    %917 = vmatprep.subr.mxu0 0.0
    %918 = vmatpush2.msra.mxu0 0.0
    %919 = vmatprep.subr.mxu0 0.0
    %920 = vmatpush2.msra.mxu0 0.0
    %921 = vmatprep.subr.mxu0 0.0
    %922 = vmatpush2.msra.mxu0 0.0
    %923 = vmatprep.subr.mxu0 0.0
    %924 = vmatpush2.msra.mxu0 0.0
    %925 = vmatprep.subr.mxu0 0.0
    %926 = vmatpush2.msra.mxu0 0.0
    %927 = vmatprep.subr.mxu0 0.0
    %928 = vmatpush2.msra.mxu0 0.0
    %929 = vmatprep.subr.mxu0 0.0
    %930 = vmatpush2.msra.mxu0 0.0
    %931 = vmatprep.subr.mxu0 0.0
    %932 = vmatpush2.msra.mxu0 0.0
    %933 = vmatprep.subr.mxu0 0.0
    %934 = vmatpush2.msra.mxu0 0.0
    %935 = vmatprep.subr.mxu0 0.0
    %936 = vmatpush2.msra.mxu0 0.0
    %937 = vmatprep.mubr.f32.mxu0 0.0
    %938 = vmatmul.mubr.f32.gmra.mxu0 %v871
    %v939 = vpop.f32.mrf.mxu0
    %v940 = vadd.f32 %v868, %v939
    %v941 = vpop.f32.mrf.mxu0
    %942 = vdwg.mxu0
    %v943 = vmax.f32 %v940, 0.0
    %v944 = vld [vmem:[%s17] sm:$0xff]
    %v945 = vld [vmem:[%s17 + $0x8] sm:$0xff]
    %v946 = vld [vmem:[%s17 + $0x10] sm:$0xff]
    %v947 = vld [vmem:[%s17 + $0x18] sm:$0xff]
    %v948 = vld [vmem:[%s18] sm:$0x1]
    %949 = vmatprep.subr.mxu0 0.0
    %950 = vmatpush1.msra.mxu0 0.0
    %951 = vmatprep.subr.mxu0 0.0
    %952 = vmatpush1.msra.mxu0 0.0
    %953 = vmatprep.subr.mxu0 0.0
    %954 = vmatpush1.msra.mxu0 0.0
    %955 = vmatprep.subr.mxu0 0.0
    %956 = vmatpush1.msra.mxu0 0.0
    %957 = vmatprep.subr.mxu0 0.0
    %958 = vmatpush1.msra.mxu0 0.0
    %959 = vmatprep.subr.mxu0 0.0
    %960 = vmatpush1.msra.mxu0 0.0
    %961 = vmatprep.subr.mxu0 0.0
    %962 = vmatpush1.msra.mxu0 0.0
    %963 = vmatprep.subr.mxu0 0.0
    %964 = vmatpush1.msra.mxu0 0.0
    %965 = vmatprep.subr.mxu0 0.0
    %966 = vmatpush1.msra.mxu0 0.0
    %967 = vmatprep.subr.mxu0 0.0
    %968 = vmatpush1.msra.mxu0 0.0
    %969 = vmatprep.subr.mxu0 0.0
    %970 = vmatpush1.msra.mxu0 0.0
    %971 = vmatprep.subr.mxu0 0.0
    %972 = vmatpush1.msra.mxu0 0.0
    %973 = vmatprep.subr.mxu0 0.0
    %974 = vmatpush1.msra.mxu0 0.0
    %975 = vmatprep.subr.mxu0 0.0
    %976 = vmatpush1.msra.mxu0 0.0
    %977 = vmatprep.subr.mxu0 0.0
    %978 = vmatpush1.msra.mxu0 0.0
    %979 = vmatprep.subr.mxu0 0.0
    %980 = vmatpush1.msra.mxu0 %v943
    %981 = vmatprep.subr.mxu0 0.0
    %982 = vmatpush2.msra.mxu0 0.0
    %983 = vmatprep.subr.mxu0 0.0
    %984 = vmatpush2.msra.mxu0 0.0
    %985 = vmatprep.subr.mxu0 0.0
    %986 = vmatpush2.msra.mxu0 0.0
    %987 = vmatprep.subr.mxu0 0.0
    %988 = vmatpush2.msra.mxu0 0.0
    %989 = vmatprep.subr.mxu0 0.0
    %990 = vmatpush2.msra.mxu0 0.0
    %991 = vmatprep.subr.mxu0 0.0
    %992 = vmatpush2.msra.mxu0 0.0
    %993 = vmatprep.subr.mxu0 0.0
    %994 = vmatpush2.msra.mxu0 0.0
    %995 = vmatprep.subr.mxu0 0.0
    %996 = vmatpush2.msra.mxu0 0.0
    %997 = vmatprep.subr.mxu0 0.0
    %998 = vmatpush2.msra.mxu0 0.0
    %999 = vmatprep.subr.mxu0 0.0
    %1000 = vmatpush2.msra.mxu0 0.0
    %1001 = vmatprep.subr.mxu0 0.0
    %1002 = vmatpush2.msra.mxu0 0.0
    %1003 = vmatprep.subr.mxu0 0.0
    %1004 = vmatpush2.msra.mxu0 0.0
    %1005 = vmatprep.subr.mxu0 0.0
    %1006 = vmatpush2.msra.mxu0 0.0
    %1007 = vmatprep.subr.mxu0 0.0
    %1008 = vmatpush2.msra.mxu0 0.0
    %1009 = vmatprep.subr.mxu0 0.0
    %1010 = vmatpush2.msra.mxu0 0.0
    %1011 = vmatprep.subr.mxu0 0.0
    %1012 = vmatpush2.msra.mxu0 0.0
    %1013 = vmatprep.mubr.f32.mxu0 0.0
    %1014 = vmatmul.mubr.f32.gmra.mxu0 %v787
    %v1015 = vpop.f32.mrf.mxu0
    %v1016 = vadd.f32 0.0, %v1015
    %v1017 = vpop.f32.mrf.mxu0
    %1018 = vdwg.mxu0
    %1020 = vrot.lane.b32.xlu0 %v1016, 16
    %v1021 = vpop.permute.xlu0 %1020
    %v1023 = vsel %vm161, %v943, %v1021
    %v1025 = vlaneseq
    %v1026 = vshrl.u32 %v1025, 7
    %v1027 = vsub.s32 0, %v1026
    %v1028 = vrot.slane %v948, %v1027
    %v1031 = vsel %vm169, %v1023, 0
    %1033 = vmatprep.subr.mxu0 0.0
    %1034 = vmatpush1.msra.mxu0 0.0
    %1035 = vmatprep.subr.mxu0 0.0
    %1036 = vmatpush1.msra.mxu0 0.0
    %1037 = vmatprep.subr.mxu0 0.0
    %1038 = vmatpush1.msra.mxu0 0.0
    %1039 = vmatprep.subr.mxu0 0.0
    %1040 = vmatpush1.msra.mxu0 0.0
    %1041 = vmatprep.subr.mxu0 0.0
    %1042 = vmatpush1.msra.mxu0 0.0
    %1043 = vmatprep.subr.mxu0 0.0
    %1044 = vmatpush1.msra.mxu0 0.0
    %1045 = vmatprep.subr.mxu0 0.0
    %1046 = vmatpush1.msra.mxu0 0.0
    %1047 = vmatprep.subr.mxu0 0.0
    %1048 = vmatpush1.msra.mxu0 0.0
    %1049 = vmatprep.subr.mxu0 0.0
    %1050 = vmatpush1.msra.mxu0 0.0
    %1051 = vmatprep.subr.mxu0 0.0
    %1052 = vmatpush1.msra.mxu0 0.0
    %1053 = vmatprep.subr.mxu0 0.0
    %1054 = vmatpush1.msra.mxu0 0.0
    %1055 = vmatprep.subr.mxu0 0.0
    %1056 = vmatpush1.msra.mxu0 0.0
    %1057 = vmatprep.subr.mxu0 0.0
    %1058 = vmatpush1.msra.mxu0 %v947
    %1059 = vmatprep.subr.mxu0 0.0
    %1060 = vmatpush1.msra.mxu0 %v946
    %1061 = vmatprep.subr.mxu0 0.0
    %1062 = vmatpush1.msra.mxu0 %v945
    %1063 = vmatprep.subr.mxu0 0.0
    %1064 = vmatpush1.msra.mxu0 %v944
    %1065 = vmatprep.subr.mxu0 0.0
    %1066 = vmatpush2.msra.mxu0 0.0
    %1067 = vmatprep.subr.mxu0 0.0
    %1068 = vmatpush2.msra.mxu0 0.0
    %1069 = vmatprep.subr.mxu0 0.0
    %1070 = vmatpush2.msra.mxu0 0.0
    %1071 = vmatprep.subr.mxu0 0.0
    %1072 = vmatpush2.msra.mxu0 0.0
    %1073 = vmatprep.subr.mxu0 0.0
    %1074 = vmatpush2.msra.mxu0 0.0
    %1075 = vmatprep.subr.mxu0 0.0
    %1076 = vmatpush2.msra.mxu0 0.0
    %1077 = vmatprep.subr.mxu0 0.0
    %1078 = vmatpush2.msra.mxu0 0.0
    %1079 = vmatprep.subr.mxu0 0.0
    %1080 = vmatpush2.msra.mxu0 0.0
    %1081 = vmatprep.subr.mxu0 0.0
    %1082 = vmatpush2.msra.mxu0 0.0
    %1083 = vmatprep.subr.mxu0 0.0
    %1084 = vmatpush2.msra.mxu0 0.0
    %1085 = vmatprep.subr.mxu0 0.0
    %1086 = vmatpush2.msra.mxu0 0.0
    %1087 = vmatprep.subr.mxu0 0.0
    %1088 = vmatpush2.msra.mxu0 0.0
    %1089 = vmatprep.subr.mxu0 0.0
    %1090 = vmatpush2.msra.mxu0 0.0
    %1091 = vmatprep.subr.mxu0 0.0
    %1092 = vmatpush2.msra.mxu0 0.0
    %1093 = vmatprep.subr.mxu0 0.0
    %1094 = vmatpush2.msra.mxu0 0.0
    %1095 = vmatprep.subr.mxu0 0.0
    %1096 = vmatpush2.msra.mxu0 0.0
    %1097 = vmatprep.mubr.f32.mxu0 0.0
    %1098 = vmatmul.mubr.f32.gmra.mxu0 %v1031
    %v1099 = vpop.f32.mrf.mxu0
    %v1100 = vadd.f32 %v1028, %v1099
    %v1101 = vpop.f32.mrf.mxu0
    %1102 = vdwg.mxu0
    %v1103 = vld [vmem:[%s19] sm:$0xff]
    %v1104 = vld [vmem:[%s19 + $0x8] sm:$0xff]
    %v1105 = vld [vmem:[%s20] sm:$0x1]
    %v1107 = vlaneseq
    %v1108 = vshrl.u32 %v1107, 7
    %v1109 = vsub.s32 0, %v1108
    %v1110 = vrot.slane %v1105, %v1109
    %v1113 = vsel %vm161, %v420, 0
    %v1116 = vsel %vm161, %v770, 0
    %1118 = vmatprep.subr.mxu0 0.0
    %1119 = vmatpush1.msra.mxu0 0.0
    %1120 = vmatprep.subr.mxu0 0.0
    %1121 = vmatpush1.msra.mxu0 0.0
    %1122 = vmatprep.subr.mxu0 0.0
    %1123 = vmatpush1.msra.mxu0 0.0
    %1124 = vmatprep.subr.mxu0 0.0
    %1125 = vmatpush1.msra.mxu0 0.0
    %1126 = vmatprep.subr.mxu0 0.0
    %1127 = vmatpush1.msra.mxu0 0.0
    %1128 = vmatprep.subr.mxu0 0.0
    %1129 = vmatpush1.msra.mxu0 0.0
    %1130 = vmatprep.subr.mxu0 0.0
    %1131 = vmatpush1.msra.mxu0 0.0
    %1132 = vmatprep.subr.mxu0 0.0
    %1133 = vmatpush1.msra.mxu0 0.0
    %1134 = vmatprep.subr.mxu0 0.0
    %1135 = vmatpush1.msra.mxu0 0.0
    %1136 = vmatprep.subr.mxu0 0.0
    %1137 = vmatpush1.msra.mxu0 0.0
    %1138 = vmatprep.subr.mxu0 0.0
    %1139 = vmatpush1.msra.mxu0 0.0
    %1140 = vmatprep.subr.mxu0 0.0
    %1141 = vmatpush1.msra.mxu0 0.0
    %1142 = vmatprep.subr.mxu0 0.0
    %1143 = vmatpush1.msra.mxu0 0.0
    %1144 = vmatprep.subr.mxu0 0.0
    %1145 = vmatpush1.msra.mxu0 0.0
    %1146 = vmatprep.subr.mxu0 0.0
    %1147 = vmatpush1.msra.mxu0 %v1104
    %1148 = vmatprep.subr.mxu0 0.0
    %1149 = vmatpush1.msra.mxu0 %v1103
    %1150 = vmatprep.subr.mxu0 0.0
    %1151 = vmatpush2.msra.mxu0 0.0
    %1152 = vmatprep.subr.mxu0 0.0
    %1153 = vmatpush2.msra.mxu0 0.0
    %1154 = vmatprep.subr.mxu0 0.0
    %1155 = vmatpush2.msra.mxu0 0.0
    %1156 = vmatprep.subr.mxu0 0.0
    %1157 = vmatpush2.msra.mxu0 0.0
    %1158 = vmatprep.subr.mxu0 0.0
    %1159 = vmatpush2.msra.mxu0 0.0
    %1160 = vmatprep.subr.mxu0 0.0
    %1161 = vmatpush2.msra.mxu0 0.0
    %1162 = vmatprep.subr.mxu0 0.0
    %1163 = vmatpush2.msra.mxu0 0.0
    %1164 = vmatprep.subr.mxu0 0.0
    %1165 = vmatpush2.msra.mxu0 0.0
    %1166 = vmatprep.subr.mxu0 0.0
    %1167 = vmatpush2.msra.mxu0 0.0
    %1168 = vmatprep.subr.mxu0 0.0
    %1169 = vmatpush2.msra.mxu0 0.0
    %1170 = vmatprep.subr.mxu0 0.0
    %1171 = vmatpush2.msra.mxu0 0.0
    %1172 = vmatprep.subr.mxu0 0.0
    %1173 = vmatpush2.msra.mxu0 0.0
    %1174 = vmatprep.subr.mxu0 0.0
    %1175 = vmatpush2.msra.mxu0 0.0
    %1176 = vmatprep.subr.mxu0 0.0
    %1177 = vmatpush2.msra.mxu0 0.0
    %1178 = vmatprep.subr.mxu0 0.0
    %1179 = vmatpush2.msra.mxu0 0.0
    %1180 = vmatprep.subr.mxu0 0.0
    %1181 = vmatpush2.msra.mxu0 0.0
    %1182 = vmatprep.mubr.f32.mxu0 0.0
    %1183 = vmatmul.mubr.f32.gmra.mxu0 %v1113
    %v1184 = vpop.f32.mrf.mxu0
    %v1185 = vadd.f32 %v1110, %v1184
    %v1186 = vpop.f32.mrf.mxu0
    %1187 = vmatprep.mubr.f32.mxu0 0.0
    %1188 = vmatmul.mubr.f32.gmra.mxu0 %v1116
    %v1189 = vpop.f32.mrf.mxu0
    %v1190 = vadd.f32 %v1110, %v1189
    %v1191 = vpop.f32.mrf.mxu0
    %1192 = vdwg.mxu0
    %v1193 = vtanh.pop %v1185
    %v1194 = vtanh.pop %v1190
    %v1195 = vmul.f32 %v1100, %v1193
    %v1196 = vsel %vm161, %v1195, 0.0
    %1197 = vadd.xlane.f32.xlu0 %v1196
    %v1198 = vpop.xlane.xlu0 %1197
    %v1199 = vmul.f32 %v1100, %v1194
    %v1200 = vsel %vm161, %v1199, 0.0
    %1201 = vadd.xlane.f32.xlu0 %v1200
    %v1202 = vpop.xlane.xlu0 %1201
    %vm1203 = vcmask 7168
    %v1204 = vsel %vm1203, %v1198, 0.0
    %1205 = vadd.xlane.f32.xlu0 %v1204
    %v1206 = vpop.xlane.xlu0 %1205
    %v1207 = vrot.slane %v1206, 4
    %v1208 = vadd.f32 %v1206, %v1207
    %v1209 = vrot.slane %v1208, 2
    %v1210 = vadd.f32 %v1208, %v1209
    %v1211 = vrot.slane %v1210, 1
    %v1212 = vadd.f32 %v1210, %v1211
    %s1213 = vtos %v1212
    %v1214 = vstv %s1213
    %v1215 = vrcp.pop 8.0
    %v1216 = vmul.f32 %v1214, %v1215
    %v1217 = vsel %vm1203, %v1202, 0.0
    %1218 = vadd.xlane.f32.xlu0 %v1217
    %v1219 = vpop.xlane.xlu0 %1218
    %v1220 = vrot.slane %v1219, 4
    %v1221 = vadd.f32 %v1219, %v1220
    %v1222 = vrot.slane %v1221, 2
    %v1223 = vadd.f32 %v1221, %v1222
    %v1224 = vrot.slane %v1223, 1
    %v1225 = vadd.f32 %v1223, %v1224
    %s1226 = vtos %v1225
    %v1227 = vstv %s1226
    %v1228 = vmul.f32 %v1227, %v1215
    %v1229 = vmax.f32 %v1216, %v1228
    %v1230 = vsub.f32 %v1216, %v1229
    %v1231 = vmul.f32 %v1230, 1.442695
    %v1232 = vpow.pop %v1231
    %v1233 = vsub.f32 %v1228, %v1229
    %v1234 = vmul.f32 %v1233, 1.442695
    %v1235 = vpow.pop %v1234
    %v1236 = vadd.f32 %v1232, %v1235
    %v1237 = vrcp.pop %v1236
    %v1238 = vmul.f32 %v1236, %v1237
    %v1239 = vsub.f32 2.0, %v1238
    %v1240 = vmul.f32 %v1237, %v1239
    %v1241 = vmul.f32 %v1232, %v1240
    %v1242 = vmul.f32 %v1241, %v420
    %v1243 = vmul.f32 %v1235, %v1240
    %v1244 = vmul.f32 %v1243, %v770
    %v1245 = vadd.f32 %v1242, %v1244
    %1246 = vst.msk [vmem:[#allocation2] sm:$0xff] %vm161, %v1245
    // Predicated region
    $region86: #{tpu_custom_call.1} parent=1 // pred_check
      _
    $region87: #{tpu_custom_call.1} parent=1 // pred_check_branch
      %1248 = sbr.rel (0) target = $region89
    $region88: #{tpu_custom_call.1} parent=1 // pred_region
      %s1250 = ssub.s32 128, 128
      %1251 = vsyncadd [#allocation3], %s1250
      %s1253 = sshll.u32 [#allocation2], 4
      %s1254 = int_to_ptr.vmem [resolvable:$true] %s1253
      %1256 = dma.vmem_to_hbm [thread:$0]  %s1254, 128, %s21, [#allocation3]
    $region89: #{tpu_custom_call.1} parent=1 // pred_fallthru
      _
    // Predicated region
    $region90: #{tpu_custom_call.1} parent=1 // pred_check
      _
    $region91: #{tpu_custom_call.1} parent=1 // pred_check_branch
      %1258 = sbr.rel (0) target = $region93
    $region92: #{tpu_custom_call.1} parent=1 // pred_region
      %1259 = dma.done [#allocation3], 128
    $region93: #{tpu_custom_call.1} parent=1 // pred_fallthru
      _
    %1260 = vsyncpa [#allocation3], 1

</llo_original>
